<compile_context>
chip_gen: v6e
topology: v6e:2x2x1
jax: 0.10.0
libtpu: 0.0.40
codegen_flags: <defaults>
</compile_context>

<pallas_src>
import functools
import math

import jax
import jax.numpy as jnp
from jax.experimental import pallas as pl
from jax.experimental.pallas import tpu as pltpu


def _gqa_kernel(x_ref, w_ref, b_ref, out_ref, *,
                batches, seq, num_groups, num_head,
                dim_k_group, dim_v_group, dim_k_head, dim_v_head,
                group_stride, inv_groups):
    """One batch-tile per grid step; batches/groups/heads unrolled in-kernel.

    x_ref   : (bt*S, D)            bf16, bt batches folded into the M rows
    w_ref   : (D, G*Tp)            bf16 fused [Wq*scale | Wk | Wv] per group,
                                   zero-padded to a 128-lane stride per group
    b_ref   : (1, G*Tp)            f32 fused biases (added in f32)
    out_ref : (bt*S, H*S + H*dvh)  f32 slab per batch row-block:
              cols [0, H*S)           group-mean softmax (rows=q, cols=k per head)
              cols [H*S, H*S+H*dvh)   group-mean softmax^T @ V per head
    """
    S, G, H = seq, num_groups, num_head
    DKG, DVG = dim_k_group, dim_v_group
    dkh, dvh = dim_k_head, dim_v_head

    # Single fused projection for ALL batches/groups/heads: one wide MXU
    # matmul, bf16 operands, f32 accumulation, f32 bias add.
    proj = jnp.dot(x_ref[...], w_ref[...],
                   preferred_element_type=jnp.float32) + b_ref[...]   # (bt*S, G*Tp)

    inv_g = jnp.float32(inv_groups)

    for b in range(batches):                       # static unroll (bt is tiny)
        row = pl.ds(b * S, S)                      # sublane-aligned (S % 8 == 0)
        qkv = proj[b * S:(b + 1) * S, :]           # (S, G*Tp)
        for g in range(G):                         # static unroll
            base = g * group_stride                # 128-lane aligned per group
            q = qkv[:, base:base + DKG].astype(jnp.bfloat16)
            k = qkv[:, base + DKG:base + 2 * DKG].astype(jnp.bfloat16)
            v = qkv[:, base + 2 * DKG:base + 2 * DKG + DVG].astype(jnp.bfloat16)

            att_parts = []
            ctx_parts = []
            for h in range(H):                     # static unroll
                # TODO(synk): at realistic S / head_dim, move heads onto a
                # batch axis and use one batched dot_general per group instead
                # of per-head 16-lane slices + micro-matmuls.
                q_h = q[:, h * dkh:(h + 1) * dkh]
                k_h = k[:, h * dkh:(h + 1) * dkh]
                v_h = v[:, h * dvh:(h + 1) * dvh]

                # scores = (Q / sqrt(dim_k)) @ K^T   (scale folded into Wq/bq)
                s = jnp.einsum('qe,ke->qk', q_h, k_h,
                               preferred_element_type=jnp.float32)     # (S, S) f32
                s = s - jnp.max(s, axis=-1, keepdims=True)
                e = jnp.exp(s)
                # softmax * 1/G: group mean folded into the EUP reciprocal;
                # ctx below is linear in `a`, so it inherits the 1/G for free.
                r = pl.reciprocal(jnp.sum(e, axis=-1, keepdims=True),
                                  approx=True) * inv_g
                a = e * r                                              # (S, S) f32
                # torch output = softmax^T @ V (contraction over the q rows).
                c = jnp.einsum('qk,qd->kd', a.astype(jnp.bfloat16), v_h,
                               preferred_element_type=jnp.float32)     # (S, dvh)
                att_parts.append(a)
                ctx_parts.append(c)

            # One lane-dense (S, H*S + H*dvh) slab per (batch, group); group
            # contributions accumulate straight into the VMEM-resident output
            # block (bounds live ranges across the G loop).
            slab = jnp.concatenate(att_parts + ctx_parts, axis=-1)
            if g == 0:
                out_ref[row, :] = slab
            else:
                out_ref[row, :] = out_ref[row, :] + slab


def group_query_attention(x, wq, bq, wk, bk, wv, bv, *, num_head):
    B, S, D = x.shape
    G, _, DKG = wq.shape
    DVG = wv.shape[2]
    H = num_head
    dkh, dvh = DKG // H, DVG // H
    T = 2 * DKG + DVG
    Tp = ((T + 127) // 128) * 128          # per-group column stride, lane aligned
    W_OUT = H * S + H * dvh

    # Fold the 1/sqrt(dim_k) score scale into Wq/bq, fuse [Q|K|V] per group,
    # pad each group's block to Tp lanes and lay all groups side by side ->
    # ONE projection weight / bias for the whole module.
    scale = 1.0 / math.sqrt(DKG)
    w_g = jnp.concatenate([wq * scale, wk, wv], axis=-1)        # (G, D, T)
    b_g = jnp.concatenate([bq * scale, bk, bv], axis=-1)        # (G, 1, T)
    if Tp != T:
        w_g = jnp.pad(w_g, ((0, 0), (0, 0), (0, Tp - T)))
        b_g = jnp.pad(b_g, ((0, 0), (0, 0), (0, Tp - T)))
    w_all = jnp.transpose(w_g, (1, 0, 2)).reshape(D, G * Tp).astype(jnp.bfloat16)
    b_all = b_g.reshape(1, G * Tp)                              # bias stays f32

    # Fold batches into the matmul M axis; keep 2 grid steps when B allows so
    # both v7x TensorCores get work ("parallel" axis; neutral on v5e/v6e).
    num_steps = 2 if (B >= 2 and B % 2 == 0) else 1
    bt = B // num_steps
    x2d = x.reshape(B * S, D).astype(jnp.bfloat16)              # bf16 MXU operand

    kernel = functools.partial(
        _gqa_kernel, batches=bt, seq=S, num_groups=G, num_head=H,
        dim_k_group=DKG, dim_v_group=DVG, dim_k_head=dkh, dim_v_head=dvh,
        group_stride=Tp, inv_groups=1.0 / G)

    def call(**weight_mode):
        return pl.pallas_call(
            kernel,
            out_shape=jax.ShapeDtypeStruct((B * S, W_OUT), jnp.float32),
            grid_spec=pltpu.PrefetchScalarGridSpec(
                num_scalar_prefetch=0,
                grid=(num_steps,),
                in_specs=[
                    pl.BlockSpec((bt * S, D), lambda i: (i, 0)),        # x tile
                    pl.BlockSpec((D, G * Tp), lambda i: (0, 0), **weight_mode),
                    pl.BlockSpec((1, G * Tp), lambda i: (0, 0), **weight_mode),
                ],
                out_specs=pl.BlockSpec((bt * S, W_OUT), lambda i: (i, 0)),
            ),
            compiler_params=pltpu.CompilerParams(
                dimension_semantics=("parallel",)),
            # TODO(synk): for realistic S, add a query-tile grid axis (smaller
            # tiles on v7x's 64 MiB VMEM vs 128 MiB on v5e/v6e) and raise
            # vmem_limit_bytes accordingly.
        )(x2d, w_all, b_all)

    try:
        # Grid-constant weights/bias: single-buffer them (saves one VMEM copy;
        # matters most against v7x's 64 MiB VMEM at realistic D*T).
        out_slab = jax.block_until_ready(call(pipeline_mode=pl.Buffered(1)))
    except Exception:   # pragma: no cover - jax without BlockSpec.pipeline_mode
        out_slab = call()

    out_slab = out_slab.reshape(B, S, W_OUT)
    # attention: kernel rows are q, per-head k blocks along lanes; torch wants
    # softmax(...).transpose(-2, -1) == [b, h, k, q].
    attention = out_slab[:, :, :H * S].reshape(B, S, H, S).transpose(0, 2, 3, 1)
    # output: kernel rows are the output positions, per-head dvh blocks along
    # lanes; torch does matmul(att, V).reshape(-1, S, input_dim) on the
    # (B, H, S, dvh) row-major array.
    output = (out_slab[:, :, H * S:].reshape(B, S, H, dvh)
              .transpose(0, 2, 1, 3).reshape(-1, S, D))
    return attention, output


def reference(x, wq, bq, wk, bk, wv, bv, *, num_head):
    """Plain-JAX mirror of the PyTorch GroupQueryAttention forward."""
    B, S, D = x.shape
    G, _, DKG = wq.shape
    DVG = wv.shape[2]
    dkh = DKG // num_head
    dvh = DVG // num_head
    hp = jax.lax.Precision.HIGHEST

    atts, outs = [], []
    for g in range(G):
        qp = jnp.einsum('bsd,de->bse', x, wq[g], precision=hp) + bq[g]
        kp = jnp.einsum('bsd,de->bse', x, wk[g], precision=hp) + bk[g]
        vp = jnp.einsum('bsd,de->bse', x, wv[g], precision=hp) + bv[g]
        Q = qp.reshape(B, S, num_head, dkh).transpose(0, 2, 1, 3)
        K = kp.reshape(B, S, num_head, dkh).transpose(0, 2, 1, 3)
        V = vp.reshape(B, S, num_head, dvh).transpose(0, 2, 1, 3)
        scores = jnp.einsum('bhqe,bhke->bhqk', Q, K, precision=hp) / math.sqrt(DKG)
        A = jax.nn.softmax(scores, axis=-1)
        att = jnp.swapaxes(A, -1, -2)
        out = jnp.einsum('bhij,bhjd->bhid', att, V, precision=hp).reshape(-1, S, D)
        atts.append(att)
        outs.append(out)
    attention = jnp.mean(jnp.stack(atts, axis=1), axis=1)
    output = jnp.mean(jnp.stack(outs, axis=1), axis=1)
    return attention, output


if __name__ == "__main__":
    # GroupQueryAttention(input_dim=32, dim_k=64, dim_v=64, num_group=2, num_head=2)
    B, S, D = 2, 8, 32
    dim_k, dim_v = 64, 64
    num_group, num_head = 2, 2
    DKG = dim_k // num_head      # per-group MHA dim_k
    DVG = dim_v // num_head      # per-group MHA dim_v

    key = jax.random.PRNGKey(0)
    kx, kq, kbq, kk, kbk, kv, kbv = jax.random.split(key, 7)

    x = jax.random.normal(kx, (B, S, D), dtype=jnp.float32)
    wq = 0.1 * jax.random.normal(kq, (num_group, D, DKG), dtype=jnp.float32)
    bq = 0.1 * jax.random.normal(kbq, (num_group, 1, DKG), dtype=jnp.float32)
    wk = 0.1 * jax.random.normal(kk, (num_group, D, DKG), dtype=jnp.float32)
    bk = 0.1 * jax.random.normal(kbk, (num_group, 1, DKG), dtype=jnp.float32)
    wv = 0.1 * jax.random.normal(kv, (num_group, D, DVG), dtype=jnp.float32)
    bv = 0.1 * jax.random.normal(kbv, (num_group, 1, DVG), dtype=jnp.float32)

    att, out = group_query_attention(x, wq, bq, wk, bk, wv, bv, num_head=num_head)
    att, out = jax.block_until_ready((att, out))

    att_ref, out_ref = reference(x, wq, bq, wk, bk, wv, bv, num_head=num_head)
    assert att.shape == att_ref.shape and out.shape == out_ref.shape
    # bf16 MXU operands + approx EUP reciprocal are deliberate precision
    # changes vs. the f32 HIGHEST-precision reference (per the perf review),
    # hence the slightly looser atol on the context output.
    assert jnp.allclose(att, att_ref, rtol=2e-2, atol=2e-3), \
        float(jnp.max(jnp.abs(att - att_ref)))
    assert jnp.allclose(out, out_ref, rtol=2e-2, atol=5e-3), \
        float(jnp.max(jnp.abs(out - out_ref)))

    print("KERNEL_OK")
</pallas_src>

<mosaic_0001>
module attributes {stable_mosaic.version = 11 : i64} {
  func.func @_gqa_kernel(%arg0: i32, %arg1: memref<8x32xbf16, #tpu.memory_space<vmem>>, %arg2: memref<32x256xbf16, #tpu.memory_space<vmem>>, %arg3: memref<1x256xf32, #tpu.memory_space<vmem>>, %arg4: memref<8x48xf32, #tpu.memory_space<vmem>>) attributes {dimension_semantics = [#tpu.dimension_semantics<parallel>], iteration_bounds = array<i64: 2>, scalar_prefetch = 0 : i64, scratch_operands = 0 : i64, tpu.core_type = #tpu.core_type<tc>, window_params = [{transform_indices = @transform_0, window_bounds = array<i64: 8, 32>}, {pipeline_mode = #tpu.pipeline_mode<synchronous>, transform_indices = @transform_1, window_bounds = array<i64: 32, 256>}, {pipeline_mode = #tpu.pipeline_mode<synchronous>, transform_indices = @transform_2, window_bounds = array<i64: 1, 256>}, {transform_indices = @transform_3, window_bounds = array<i64: 8, 48>}]} {
    %c0 = arith.constant 0 : index
    %c0_0 = arith.constant 0 : index
    %0 = vector.load %arg1[%c0, %c0_0] : memref<8x32xbf16, #tpu.memory_space<vmem>>, vector<8x32xbf16>
    %c0_1 = arith.constant 0 : index
    %c0_2 = arith.constant 0 : index
    %1 = vector.load %arg2[%c0_1, %c0_2] : memref<32x256xbf16, #tpu.memory_space<vmem>>, vector<32x256xbf16>
    %cst = arith.constant dense<0.000000e+00> : vector<8x256xf32>
    %2 = tpu.matmul %0, %1, %cst {dimension_numbers = #tpu.dot_dimension_numbers<[1], [0], [0], [1], [0, 0, 1, 1], [], []>} : vector<8x32xbf16>, vector<32x256xbf16>, vector<8x256xf32> -> vector<8x256xf32>
    %c0_3 = arith.constant 0 : index
    %c0_4 = arith.constant 0 : index
    %3 = vector.load %arg3[%c0_3, %c0_4] : memref<1x256xf32, #tpu.memory_space<vmem>>, vector<1x256xf32>
    %4 = vector.broadcast %3 : vector<1x256xf32> to vector<8x256xf32>
    %5 = arith.addf %2, %4 : vector<8x256xf32>
    %6 = vector.extract_strided_slice %5 {offsets = [0, 0], sizes = [8, 32], strides = [1, 1]} : vector<8x256xf32> to vector<8x32xf32>
    %7 = arith.truncf %6 : vector<8x32xf32> to vector<8x32xbf16>
    %8 = vector.extract_strided_slice %5 {offsets = [0, 32], sizes = [8, 32], strides = [1, 1]} : vector<8x256xf32> to vector<8x32xf32>
    %9 = arith.truncf %8 : vector<8x32xf32> to vector<8x32xbf16>
    %10 = vector.extract_strided_slice %5 {offsets = [0, 64], sizes = [8, 32], strides = [1, 1]} : vector<8x256xf32> to vector<8x32xf32>
    %11 = arith.truncf %10 : vector<8x32xf32> to vector<8x32xbf16>
    %12 = vector.extract_strided_slice %7 {offsets = [0, 0], sizes = [8, 16], strides = [1, 1]} : vector<8x32xbf16> to vector<8x16xbf16>
    %13 = vector.extract_strided_slice %9 {offsets = [0, 0], sizes = [8, 16], strides = [1, 1]} : vector<8x32xbf16> to vector<8x16xbf16>
    %14 = vector.extract_strided_slice %11 {offsets = [0, 0], sizes = [8, 16], strides = [1, 1]} : vector<8x32xbf16> to vector<8x16xbf16>
    "tpu.trace_start"() <{level = 10 : i32, message = "qe,ke->qk"}> : () -> ()
    %cst_5 = arith.constant dense<0.000000e+00> : vector<8x8xf32>
    %15 = tpu.matmul %12, %13, %cst_5 {dimension_numbers = #tpu.dot_dimension_numbers<[1], [1], [0], [0], [0, 0, 1, 0], [], []>} : vector<8x16xbf16>, vector<8x16xbf16>, vector<8x8xf32> -> vector<8x8xf32>
    "tpu.trace_stop"() : () -> ()
    %cst_6 = arith.constant dense<0xFF800000> : vector<8xf32>
    %16 = vector.multi_reduction <maximumf>, %15, %cst_6 [1] : vector<8x8xf32> to vector<8xf32>
    %17 = vector.shape_cast %16 : vector<8xf32> to vector<8x1xf32>
    %18 = vector.broadcast %17 : vector<8x1xf32> to vector<8x8xf32>
    %19 = arith.subf %15, %18 : vector<8x8xf32>
    %20 = math.exp %19 : vector<8x8xf32>
    %cst_7 = arith.constant dense<0.000000e+00> : vector<8xf32>
    %21 = vector.multi_reduction <add>, %20, %cst_7 [1] : vector<8x8xf32> to vector<8xf32>
    %22 = vector.shape_cast %21 : vector<8xf32> to vector<8x1xf32>
    %23 = tpu.reciprocal %22 {approx = true} : vector<8x1xf32> -> vector<8x1xf32>
    %cst_8 = arith.constant 5.000000e-01 : f32
    %24 = vector.broadcast %cst_8 : f32 to vector<8x1xf32>
    %25 = arith.mulf %23, %24 : vector<8x1xf32>
    %26 = vector.broadcast %25 : vector<8x1xf32> to vector<8x8xf32>
    %27 = arith.mulf %20, %26 : vector<8x8xf32>
    %28 = arith.truncf %27 : vector<8x8xf32> to vector<8x8xbf16>
    "tpu.trace_start"() <{level = 10 : i32, message = "qk,qd->kd"}> : () -> ()
    %cst_9 = arith.constant dense<0.000000e+00> : vector<8x16xf32>
    %29 = tpu.matmul %28, %14, %cst_9 {dimension_numbers = #tpu.dot_dimension_numbers<[0], [0], [1], [1], [0, 1, 1, 1], [], []>} : vector<8x8xbf16>, vector<8x16xbf16>, vector<8x16xf32> -> vector<8x16xf32>
    "tpu.trace_stop"() : () -> ()
    %30 = vector.extract_strided_slice %7 {offsets = [0, 16], sizes = [8, 16], strides = [1, 1]} : vector<8x32xbf16> to vector<8x16xbf16>
    %31 = vector.extract_strided_slice %9 {offsets = [0, 16], sizes = [8, 16], strides = [1, 1]} : vector<8x32xbf16> to vector<8x16xbf16>
    %32 = vector.extract_strided_slice %11 {offsets = [0, 16], sizes = [8, 16], strides = [1, 1]} : vector<8x32xbf16> to vector<8x16xbf16>
    "tpu.trace_start"() <{level = 10 : i32, message = "qe,ke->qk"}> : () -> ()
    %cst_10 = arith.constant dense<0.000000e+00> : vector<8x8xf32>
    %33 = tpu.matmul %30, %31, %cst_10 {dimension_numbers = #tpu.dot_dimension_numbers<[1], [1], [0], [0], [0, 0, 1, 0], [], []>} : vector<8x16xbf16>, vector<8x16xbf16>, vector<8x8xf32> -> vector<8x8xf32>
    "tpu.trace_stop"() : () -> ()
    %cst_11 = arith.constant dense<0xFF800000> : vector<8xf32>
    %34 = vector.multi_reduction <maximumf>, %33, %cst_11 [1] : vector<8x8xf32> to vector<8xf32>
    %35 = vector.shape_cast %34 : vector<8xf32> to vector<8x1xf32>
    %36 = vector.broadcast %35 : vector<8x1xf32> to vector<8x8xf32>
    %37 = arith.subf %33, %36 : vector<8x8xf32>
    %38 = math.exp %37 : vector<8x8xf32>
    %cst_12 = arith.constant dense<0.000000e+00> : vector<8xf32>
    %39 = vector.multi_reduction <add>, %38, %cst_12 [1] : vector<8x8xf32> to vector<8xf32>
    %40 = vector.shape_cast %39 : vector<8xf32> to vector<8x1xf32>
    %41 = tpu.reciprocal %40 {approx = true} : vector<8x1xf32> -> vector<8x1xf32>
    %cst_13 = arith.constant 5.000000e-01 : f32
    %42 = vector.broadcast %cst_13 : f32 to vector<8x1xf32>
    %43 = arith.mulf %41, %42 : vector<8x1xf32>
    %44 = vector.broadcast %43 : vector<8x1xf32> to vector<8x8xf32>
    %45 = arith.mulf %38, %44 : vector<8x8xf32>
    %46 = arith.truncf %45 : vector<8x8xf32> to vector<8x8xbf16>
    "tpu.trace_start"() <{level = 10 : i32, message = "qk,qd->kd"}> : () -> ()
    %cst_14 = arith.constant dense<0.000000e+00> : vector<8x16xf32>
    %47 = tpu.matmul %46, %32, %cst_14 {dimension_numbers = #tpu.dot_dimension_numbers<[0], [0], [1], [1], [0, 1, 1, 1], [], []>} : vector<8x8xbf16>, vector<8x16xbf16>, vector<8x16xf32> -> vector<8x16xf32>
    "tpu.trace_stop"() : () -> ()
    %48 = tpu.concatenate %27, %45, %29, %47 in 1 : vector<8x8xf32>, vector<8x8xf32>, vector<8x16xf32>, vector<8x16xf32> -> vector<8x48xf32>
    %c0_15 = arith.constant 0 : index
    %c0_16 = arith.constant 0 : index
    %49 = vector.load %arg4[%c0_15, %c0_16] : memref<8x48xf32, #tpu.memory_space<vmem>>, vector<8x48xf32>
    tpu.vector_store %arg4[%c0_15, %c0_16], %48 {strides = array<i32>} : memref<8x48xf32, #tpu.memory_space<vmem>>, vector<8x48xf32>,
    %50 = vector.extract_strided_slice %5 {offsets = [0, 128], sizes = [8, 32], strides = [1, 1]} : vector<8x256xf32> to vector<8x32xf32>
    %51 = arith.truncf %50 : vector<8x32xf32> to vector<8x32xbf16>
    %52 = vector.extract_strided_slice %5 {offsets = [0, 160], sizes = [8, 32], strides = [1, 1]} : vector<8x256xf32> to vector<8x32xf32>
    %53 = arith.truncf %52 : vector<8x32xf32> to vector<8x32xbf16>
    %54 = vector.extract_strided_slice %5 {offsets = [0, 192], sizes = [8, 32], strides = [1, 1]} : vector<8x256xf32> to vector<8x32xf32>
    %55 = arith.truncf %54 : vector<8x32xf32> to vector<8x32xbf16>
    %56 = vector.extract_strided_slice %51 {offsets = [0, 0], sizes = [8, 16], strides = [1, 1]} : vector<8x32xbf16> to vector<8x16xbf16>
    %57 = vector.extract_strided_slice %53 {offsets = [0, 0], sizes = [8, 16], strides = [1, 1]} : vector<8x32xbf16> to vector<8x16xbf16>
    %58 = vector.extract_strided_slice %55 {offsets = [0, 0], sizes = [8, 16], strides = [1, 1]} : vector<8x32xbf16> to vector<8x16xbf16>
    "tpu.trace_start"() <{level = 10 : i32, message = "qe,ke->qk"}> : () -> ()
    %cst_17 = arith.constant dense<0.000000e+00> : vector<8x8xf32>
    %59 = tpu.matmul %56, %57, %cst_17 {dimension_numbers = #tpu.dot_dimension_numbers<[1], [1], [0], [0], [0, 0, 1, 0], [], []>} : vector<8x16xbf16>, vector<8x16xbf16>, vector<8x8xf32> -> vector<8x8xf32>
    "tpu.trace_stop"() : () -> ()
    %cst_18 = arith.constant dense<0xFF800000> : vector<8xf32>
    %60 = vector.multi_reduction <maximumf>, %59, %cst_18 [1] : vector<8x8xf32> to vector<8xf32>
    %61 = vector.shape_cast %60 : vector<8xf32> to vector<8x1xf32>
    %62 = vector.broadcast %61 : vector<8x1xf32> to vector<8x8xf32>
    %63 = arith.subf %59, %62 : vector<8x8xf32>
    %64 = math.exp %63 : vector<8x8xf32>
    %cst_19 = arith.constant dense<0.000000e+00> : vector<8xf32>
    %65 = vector.multi_reduction <add>, %64, %cst_19 [1] : vector<8x8xf32> to vector<8xf32>
    %66 = vector.shape_cast %65 : vector<8xf32> to vector<8x1xf32>
    %67 = tpu.reciprocal %66 {approx = true} : vector<8x1xf32> -> vector<8x1xf32>
    %cst_20 = arith.constant 5.000000e-01 : f32
    %68 = vector.broadcast %cst_20 : f32 to vector<8x1xf32>
    %69 = arith.mulf %67, %68 : vector<8x1xf32>
    %70 = vector.broadcast %69 : vector<8x1xf32> to vector<8x8xf32>
    %71 = arith.mulf %64, %70 : vector<8x8xf32>
    %72 = arith.truncf %71 : vector<8x8xf32> to vector<8x8xbf16>
    "tpu.trace_start"() <{level = 10 : i32, message = "qk,qd->kd"}> : () -> ()
    %cst_21 = arith.constant dense<0.000000e+00> : vector<8x16xf32>
    %73 = tpu.matmul %72, %58, %cst_21 {dimension_numbers = #tpu.dot_dimension_numbers<[0], [0], [1], [1], [0, 1, 1, 1], [], []>} : vector<8x8xbf16>, vector<8x16xbf16>, vector<8x16xf32> -> vector<8x16xf32>
    "tpu.trace_stop"() : () -> ()
    %74 = vector.extract_strided_slice %51 {offsets = [0, 16], sizes = [8, 16], strides = [1, 1]} : vector<8x32xbf16> to vector<8x16xbf16>
    %75 = vector.extract_strided_slice %53 {offsets = [0, 16], sizes = [8, 16], strides = [1, 1]} : vector<8x32xbf16> to vector<8x16xbf16>
    %76 = vector.extract_strided_slice %55 {offsets = [0, 16], sizes = [8, 16], strides = [1, 1]} : vector<8x32xbf16> to vector<8x16xbf16>
    "tpu.trace_start"() <{level = 10 : i32, message = "qe,ke->qk"}> : () -> ()
    %cst_22 = arith.constant dense<0.000000e+00> : vector<8x8xf32>
    %77 = tpu.matmul %74, %75, %cst_22 {dimension_numbers = #tpu.dot_dimension_numbers<[1], [1], [0], [0], [0, 0, 1, 0], [], []>} : vector<8x16xbf16>, vector<8x16xbf16>, vector<8x8xf32> -> vector<8x8xf32>
    "tpu.trace_stop"() : () -> ()
    %cst_23 = arith.constant dense<0xFF800000> : vector<8xf32>
    %78 = vector.multi_reduction <maximumf>, %77, %cst_23 [1] : vector<8x8xf32> to vector<8xf32>
    %79 = vector.shape_cast %78 : vector<8xf32> to vector<8x1xf32>
    %80 = vector.broadcast %79 : vector<8x1xf32> to vector<8x8xf32>
    %81 = arith.subf %77, %80 : vector<8x8xf32>
    %82 = math.exp %81 : vector<8x8xf32>
    %cst_24 = arith.constant dense<0.000000e+00> : vector<8xf32>
    %83 = vector.multi_reduction <add>, %82, %cst_24 [1] : vector<8x8xf32> to vector<8xf32>
    %84 = vector.shape_cast %83 : vector<8xf32> to vector<8x1xf32>
    %85 = tpu.reciprocal %84 {approx = true} : vector<8x1xf32> -> vector<8x1xf32>
    %cst_25 = arith.constant 5.000000e-01 : f32
    %86 = vector.broadcast %cst_25 : f32 to vector<8x1xf32>
    %87 = arith.mulf %85, %86 : vector<8x1xf32>
    %88 = vector.broadcast %87 : vector<8x1xf32> to vector<8x8xf32>
    %89 = arith.mulf %82, %88 : vector<8x8xf32>
    %90 = arith.truncf %89 : vector<8x8xf32> to vector<8x8xbf16>
    "tpu.trace_start"() <{level = 10 : i32, message = "qk,qd->kd"}> : () -> ()
    %cst_26 = arith.constant dense<0.000000e+00> : vector<8x16xf32>
    %91 = tpu.matmul %90, %76, %cst_26 {dimension_numbers = #tpu.dot_dimension_numbers<[0], [0], [1], [1], [0, 1, 1, 1], [], []>} : vector<8x8xbf16>, vector<8x16xbf16>, vector<8x16xf32> -> vector<8x16xf32>
    "tpu.trace_stop"() : () -> ()
    %92 = tpu.concatenate %71, %89, %73, %91 in 1 : vector<8x8xf32>, vector<8x8xf32>, vector<8x16xf32>, vector<8x16xf32> -> vector<8x48xf32>
    %c0_27 = arith.constant 0 : index
    %c0_28 = arith.constant 0 : index
    %93 = vector.load %arg4[%c0_27, %c0_28] : memref<8x48xf32, #tpu.memory_space<vmem>>, vector<8x48xf32>
    %94 = arith.addf %93, %92 : vector<8x48xf32>
    %c0_29 = arith.constant 0 : index
    %c0_30 = arith.constant 0 : index
    %95 = vector.load %arg4[%c0_29, %c0_30] : memref<8x48xf32, #tpu.memory_space<vmem>>, vector<8x48xf32>
    tpu.vector_store %arg4[%c0_29, %c0_30], %94 {strides = array<i32>} : memref<8x48xf32, #tpu.memory_space<vmem>>, vector<8x48xf32>,
    return
  }
  func.func @transform_0(%arg0: i32) -> (i32, i32) {
    %c0_i32 = arith.constant 0 : i32
    %c0_i32_0 = arith.constant 0 : i32
    return %arg0, %c0_i32 : i32, i32
  }
  func.func @transform_1(%arg0: i32) -> (i32, i32) {
    %c0_i32 = arith.constant 0 : i32
    %c0_i32_0 = arith.constant 0 : i32
    %c0_i32_1 = arith.constant 0 : i32
    return %c0_i32, %c0_i32_0 : i32, i32
  }
  func.func @transform_2(%arg0: i32) -> (i32, i32) {
    %c0_i32 = arith.constant 0 : i32
    %c0_i32_0 = arith.constant 0 : i32
    %c0_i32_1 = arith.constant 0 : i32
    return %c0_i32, %c0_i32_0 : i32, i32
  }
  func.func @transform_3(%arg0: i32) -> (i32, i32) {
    %c0_i32 = arith.constant 0 : i32
    %c0_i32_0 = arith.constant 0 : i32
    return %arg0, %c0_i32 : i32, i32
  }
}

module attributes {stable_mosaic.version = 11 : i64} {
  func.func @_gqa_kernel(%arg0: i32, %arg1: memref<8x32xbf16, #tpu.memory_space<vmem>>, %arg2: memref<32x256xbf16, #tpu.memory_space<vmem>>, %arg3: memref<1x256xf32, #tpu.memory_space<vmem>>, %arg4: memref<8x48xf32, #tpu.memory_space<vmem>>) attributes {dimension_semantics = [#tpu.dimension_semantics<parallel>], iteration_bounds = array<i64: 2>, scalar_prefetch = 0 : i64, scratch_operands = 0 : i64, tpu.core_type = #tpu.core_type<tc>, window_params = [{transform_indices = @transform_0, window_bounds = array<i64: 8, 32>}, {pipeline_mode = #tpu.pipeline_mode<synchronous>, transform_indices = @transform_1, window_bounds = array<i64: 32, 256>}, {pipeline_mode = #tpu.pipeline_mode<synchronous>, transform_indices = @transform_2, window_bounds = array<i64: 1, 256>}, {transform_indices = @transform_3, window_bounds = array<i64: 8, 48>}]} {
    %c0 = arith.constant 0 : index
    %c0_0 = arith.constant 0 : index
    %0 = vector.load %arg1[%c0, %c0_0] : memref<8x32xbf16, #tpu.memory_space<vmem>>, vector<8x32xbf16>
    %c0_1 = arith.constant 0 : index
    %c0_2 = arith.constant 0 : index
    %1 = vector.load %arg2[%c0_1, %c0_2] : memref<32x256xbf16, #tpu.memory_space<vmem>>, vector<32x256xbf16>
    %cst = arith.constant dense<0.000000e+00> : vector<8x256xf32>
    %2 = tpu.matmul %0, %1, %cst {dimension_numbers = #tpu.dot_dimension_numbers<[1], [0], [0], [1], [0, 0, 1, 1], [], []>} : vector<8x32xbf16>, vector<32x256xbf16>, vector<8x256xf32> -> vector<8x256xf32>
    %c0_3 = arith.constant 0 : index
    %c0_4 = arith.constant 0 : index
    %3 = vector.load %arg3[%c0_3, %c0_4] : memref<1x256xf32, #tpu.memory_space<vmem>>, vector<1x256xf32>
    %4 = vector.broadcast %3 : vector<1x256xf32> to vector<8x256xf32>
    %5 = arith.addf %2, %4 : vector<8x256xf32>
    %6 = vector.extract_strided_slice %5 {offsets = [0, 0], sizes = [8, 32], strides = [1, 1]} : vector<8x256xf32> to vector<8x32xf32>
    %7 = arith.truncf %6 : vector<8x32xf32> to vector<8x32xbf16>
    %8 = vector.extract_strided_slice %5 {offsets = [0, 32], sizes = [8, 32], strides = [1, 1]} : vector<8x256xf32> to vector<8x32xf32>
    %9 = arith.truncf %8 : vector<8x32xf32> to vector<8x32xbf16>
    %10 = vector.extract_strided_slice %5 {offsets = [0, 64], sizes = [8, 32], strides = [1, 1]} : vector<8x256xf32> to vector<8x32xf32>
    %11 = arith.truncf %10 : vector<8x32xf32> to vector<8x32xbf16>
    %12 = vector.extract_strided_slice %7 {offsets = [0, 0], sizes = [8, 16], strides = [1, 1]} : vector<8x32xbf16> to vector<8x16xbf16>
    %13 = vector.extract_strided_slice %9 {offsets = [0, 0], sizes = [8, 16], strides = [1, 1]} : vector<8x32xbf16> to vector<8x16xbf16>
    %14 = vector.extract_strided_slice %11 {offsets = [0, 0], sizes = [8, 16], strides = [1, 1]} : vector<8x32xbf16> to vector<8x16xbf16>
    "tpu.trace_start"() <{level = 10 : i32, message = "qe,ke->qk"}> : () -> ()
    %cst_5 = arith.constant dense<0.000000e+00> : vector<8x8xf32>
    %15 = tpu.matmul %12, %13, %cst_5 {dimension_numbers = #tpu.dot_dimension_numbers<[1], [1], [0], [0], [0, 0, 1, 0], [], []>} : vector<8x16xbf16>, vector<8x16xbf16>, vector<8x8xf32> -> vector<8x8xf32>
    "tpu.trace_stop"() : () -> ()
    %cst_6 = arith.constant dense<0xFF800000> : vector<8xf32>
    %16 = vector.multi_reduction <maximumf>, %15, %cst_6 [1] : vector<8x8xf32> to vector<8xf32>
    %17 = vector.shape_cast %16 : vector<8xf32> to vector<8x1xf32>
    %18 = vector.broadcast %17 : vector<8x1xf32> to vector<8x8xf32>
    %19 = arith.subf %15, %18 : vector<8x8xf32>
    %20 = math.exp %19 : vector<8x8xf32>
    %cst_7 = arith.constant dense<0.000000e+00> : vector<8xf32>
    %21 = vector.multi_reduction <add>, %20, %cst_7 [1] : vector<8x8xf32> to vector<8xf32>
    %22 = vector.shape_cast %21 : vector<8xf32> to vector<8x1xf32>
    %23 = tpu.reciprocal %22 {approx = true} : vector<8x1xf32> -> vector<8x1xf32>
    %cst_8 = arith.constant 5.000000e-01 : f32
    %24 = vector.broadcast %cst_8 : f32 to vector<8x1xf32>
    %25 = arith.mulf %23, %24 : vector<8x1xf32>
    %26 = vector.broadcast %25 : vector<8x1xf32> to vector<8x8xf32>
    %27 = arith.mulf %20, %26 : vector<8x8xf32>
    %28 = arith.truncf %27 : vector<8x8xf32> to vector<8x8xbf16>
    "tpu.trace_start"() <{level = 10 : i32, message = "qk,qd->kd"}> : () -> ()
    %cst_9 = arith.constant dense<0.000000e+00> : vector<8x16xf32>
    %29 = tpu.matmul %28, %14, %cst_9 {dimension_numbers = #tpu.dot_dimension_numbers<[0], [0], [1], [1], [0, 1, 1, 1], [], []>} : vector<8x8xbf16>, vector<8x16xbf16>, vector<8x16xf32> -> vector<8x16xf32>
    "tpu.trace_stop"() : () -> ()
    %30 = vector.extract_strided_slice %7 {offsets = [0, 16], sizes = [8, 16], strides = [1, 1]} : vector<8x32xbf16> to vector<8x16xbf16>
    %31 = vector.extract_strided_slice %9 {offsets = [0, 16], sizes = [8, 16], strides = [1, 1]} : vector<8x32xbf16> to vector<8x16xbf16>
    %32 = vector.extract_strided_slice %11 {offsets = [0, 16], sizes = [8, 16], strides = [1, 1]} : vector<8x32xbf16> to vector<8x16xbf16>
    "tpu.trace_start"() <{level = 10 : i32, message = "qe,ke->qk"}> : () -> ()
    %cst_10 = arith.constant dense<0.000000e+00> : vector<8x8xf32>
    %33 = tpu.matmul %30, %31, %cst_10 {dimension_numbers = #tpu.dot_dimension_numbers<[1], [1], [0], [0], [0, 0, 1, 0], [], []>} : vector<8x16xbf16>, vector<8x16xbf16>, vector<8x8xf32> -> vector<8x8xf32>
    "tpu.trace_stop"() : () -> ()
    %cst_11 = arith.constant dense<0xFF800000> : vector<8xf32>
    %34 = vector.multi_reduction <maximumf>, %33, %cst_11 [1] : vector<8x8xf32> to vector<8xf32>
    %35 = vector.shape_cast %34 : vector<8xf32> to vector<8x1xf32>
    %36 = vector.broadcast %35 : vector<8x1xf32> to vector<8x8xf32>
    %37 = arith.subf %33, %36 : vector<8x8xf32>
    %38 = math.exp %37 : vector<8x8xf32>
    %cst_12 = arith.constant dense<0.000000e+00> : vector<8xf32>
    %39 = vector.multi_reduction <add>, %38, %cst_12 [1] : vector<8x8xf32> to vector<8xf32>
    %40 = vector.shape_cast %39 : vector<8xf32> to vector<8x1xf32>
    %41 = tpu.reciprocal %40 {approx = true} : vector<8x1xf32> -> vector<8x1xf32>
    %cst_13 = arith.constant 5.000000e-01 : f32
    %42 = vector.broadcast %cst_13 : f32 to vector<8x1xf32>
    %43 = arith.mulf %41, %42 : vector<8x1xf32>
    %44 = vector.broadcast %43 : vector<8x1xf32> to vector<8x8xf32>
    %45 = arith.mulf %38, %44 : vector<8x8xf32>
    %46 = arith.truncf %45 : vector<8x8xf32> to vector<8x8xbf16>
    "tpu.trace_start"() <{level = 10 : i32, message = "qk,qd->kd"}> : () -> ()
    %cst_14 = arith.constant dense<0.000000e+00> : vector<8x16xf32>
    %47 = tpu.matmul %46, %32, %cst_14 {dimension_numbers = #tpu.dot_dimension_numbers<[0], [0], [1], [1], [0, 1, 1, 1], [], []>} : vector<8x8xbf16>, vector<8x16xbf16>, vector<8x16xf32> -> vector<8x16xf32>
    "tpu.trace_stop"() : () -> ()
    %48 = tpu.concatenate %27, %45, %29, %47 in 1 : vector<8x8xf32>, vector<8x8xf32>, vector<8x16xf32>, vector<8x16xf32> -> vector<8x48xf32>
    %c0_15 = arith.constant 0 : index
    %c0_16 = arith.constant 0 : index
    %49 = vector.load %arg4[%c0_15, %c0_16] : memref<8x48xf32, #tpu.memory_space<vmem>>, vector<8x48xf32>
    tpu.vector_store %arg4[%c0_15, %c0_16], %48 {strides = array<i32>} : memref<8x48xf32, #tpu.memory_space<vmem>>, vector<8x48xf32>,
    %50 = vector.extract_strided_slice %5 {offsets = [0, 128], sizes = [8, 32], strides = [1, 1]} : vector<8x256xf32> to vector<8x32xf32>
    %51 = arith.truncf %50 : vector<8x32xf32> to vector<8x32xbf16>
    %52 = vector.extract_strided_slice %5 {offsets = [0, 160], sizes = [8, 32], strides = [1, 1]} : vector<8x256xf32> to vector<8x32xf32>
    %53 = arith.truncf %52 : vector<8x32xf32> to vector<8x32xbf16>
    %54 = vector.extract_strided_slice %5 {offsets = [0, 192], sizes = [8, 32], strides = [1, 1]} : vector<8x256xf32> to vector<8x32xf32>
    %55 = arith.truncf %54 : vector<8x32xf32> to vector<8x32xbf16>
    %56 = vector.extract_strided_slice %51 {offsets = [0, 0], sizes = [8, 16], strides = [1, 1]} : vector<8x32xbf16> to vector<8x16xbf16>
    %57 = vector.extract_strided_slice %53 {offsets = [0, 0], sizes = [8, 16], strides = [1, 1]} : vector<8x32xbf16> to vector<8x16xbf16>
    %58 = vector.extract_strided_slice %55 {offsets = [0, 0], sizes = [8, 16], strides = [1, 1]} : vector<8x32xbf16> to vector<8x16xbf16>
    "tpu.trace_start"() <{level = 10 : i32, message = "qe,ke->qk"}> : () -> ()
    %cst_17 = arith.constant dense<0.000000e+00> : vector<8x8xf32>
    %59 = tpu.matmul %56, %57, %cst_17 {dimension_numbers = #tpu.dot_dimension_numbers<[1], [1], [0], [0], [0, 0, 1, 0], [], []>} : vector<8x16xbf16>, vector<8x16xbf16>, vector<8x8xf32> -> vector<8x8xf32>
    "tpu.trace_stop"() : () -> ()
    %cst_18 = arith.constant dense<0xFF800000> : vector<8xf32>
    %60 = vector.multi_reduction <maximumf>, %59, %cst_18 [1] : vector<8x8xf32> to vector<8xf32>
    %61 = vector.shape_cast %60 : vector<8xf32> to vector<8x1xf32>
    %62 = vector.broadcast %61 : vector<8x1xf32> to vector<8x8xf32>
    %63 = arith.subf %59, %62 : vector<8x8xf32>
    %64 = math.exp %63 : vector<8x8xf32>
    %cst_19 = arith.constant dense<0.000000e+00> : vector<8xf32>
    %65 = vector.multi_reduction <add>, %64, %cst_19 [1] : vector<8x8xf32> to vector<8xf32>
    %66 = vector.shape_cast %65 : vector<8xf32> to vector<8x1xf32>
    %67 = tpu.reciprocal %66 {approx = true} : vector<8x1xf32> -> vector<8x1xf32>
    %cst_20 = arith.constant 5.000000e-01 : f32
    %68 = vector.broadcast %cst_20 : f32 to vector<8x1xf32>
    %69 = arith.mulf %67, %68 : vector<8x1xf32>
    %70 = vector.broadcast %69 : vector<8x1xf32> to vector<8x8xf32>
    %71 = arith.mulf %64, %70 : vector<8x8xf32>
    %72 = arith.truncf %71 : vector<8x8xf32> to vector<8x8xbf16>
    "tpu.trace_start"() <{level = 10 : i32, message = "qk,qd->kd"}> : () -> ()
    %cst_21 = arith.constant dense<0.000000e+00> : vector<8x16xf32>
    %73 = tpu.matmul %72, %58, %cst_21 {dimension_numbers = #tpu.dot_dimension_numbers<[0], [0], [1], [1], [0, 1, 1, 1], [], []>} : vector<8x8xbf16>, vector<8x16xbf16>, vector<8x16xf32> -> vector<8x16xf32>
    "tpu.trace_stop"() : () -> ()
    %74 = vector.extract_strided_slice %51 {offsets = [0, 16], sizes = [8, 16], strides = [1, 1]} : vector<8x32xbf16> to vector<8x16xbf16>
    %75 = vector.extract_strided_slice %53 {offsets = [0, 16], sizes = [8, 16], strides = [1, 1]} : vector<8x32xbf16> to vector<8x16xbf16>
    %76 = vector.extract_strided_slice %55 {offsets = [0, 16], sizes = [8, 16], strides = [1, 1]} : vector<8x32xbf16> to vector<8x16xbf16>
    "tpu.trace_start"() <{level = 10 : i32, message = "qe,ke->qk"}> : () -> ()
    %cst_22 = arith.constant dense<0.000000e+00> : vector<8x8xf32>
    %77 = tpu.matmul %74, %75, %cst_22 {dimension_numbers = #tpu.dot_dimension_numbers<[1], [1], [0], [0], [0, 0, 1, 0], [], []>} : vector<8x16xbf16>, vector<8x16xbf16>, vector<8x8xf32> -> vector<8x8xf32>
    "tpu.trace_stop"() : () -> ()
    %cst_23 = arith.constant dense<0xFF800000> : vector<8xf32>
    %78 = vector.multi_reduction <maximumf>, %77, %cst_23 [1] : vector<8x8xf32> to vector<8xf32>
    %79 = vector.shape_cast %78 : vector<8xf32> to vector<8x1xf32>
    %80 = vector.broadcast %79 : vector<8x1xf32> to vector<8x8xf32>
    %81 = arith.subf %77, %80 : vector<8x8xf32>
    %82 = math.exp %81 : vector<8x8xf32>
    %cst_24 = arith.constant dense<0.000000e+00> : vector<8xf32>
    %83 = vector.multi_reduction <add>, %82, %cst_24 [1] : vector<8x8xf32> to vector<8xf32>
    %84 = vector.shape_cast %83 : vector<8xf32> to vector<8x1xf32>
    %85 = tpu.reciprocal %84 {approx = true} : vector<8x1xf32> -> vector<8x1xf32>
    %cst_25 = arith.constant 5.000000e-01 : f32
    %86 = vector.broadcast %cst_25 : f32 to vector<8x1xf32>
    %87 = arith.mulf %85, %86 : vector<8x1xf32>
    %88 = vector.broadcast %87 : vector<8x1xf32> to vector<8x8xf32>
    %89 = arith.mulf %82, %88 : vector<8x8xf32>
    %90 = arith.truncf %89 : vector<8x8xf32> to vector<8x8xbf16>
    "tpu.trace_start"() <{level = 10 : i32, message = "qk,qd->kd"}> : () -> ()
    %cst_26 = arith.constant dense<0.000000e+00> : vector<8x16xf32>
    %91 = tpu.matmul %90, %76, %cst_26 {dimension_numbers = #tpu.dot_dimension_numbers<[0], [0], [1], [1], [0, 1, 1, 1], [], []>} : vector<8x8xbf16>, vector<8x16xbf16>, vector<8x16xf32> -> vector<8x16xf32>
    "tpu.trace_stop"() : () -> ()
    %92 = tpu.concatenate %71, %89, %73, %91 in 1 : vector<8x8xf32>, vector<8x8xf32>, vector<8x16xf32>, vector<8x16xf32> -> vector<8x48xf32>
    %c0_27 = arith.constant 0 : index
    %c0_28 = arith.constant 0 : index
    %93 = vector.load %arg4[%c0_27, %c0_28] : memref<8x48xf32, #tpu.memory_space<vmem>>, vector<8x48xf32>
    %94 = arith.addf %93, %92 : vector<8x48xf32>
    %c0_29 = arith.constant 0 : index
    %c0_30 = arith.constant 0 : index
    %95 = vector.load %arg4[%c0_29, %c0_30] : memref<8x48xf32, #tpu.memory_space<vmem>>, vector<8x48xf32>
    tpu.vector_store %arg4[%c0_29, %c0_30], %94 {strides = array<i32>} : memref<8x48xf32, #tpu.memory_space<vmem>>, vector<8x48xf32>,
    return
  }
  func.func @transform_0(%arg0: i32) -> (i32, i32) {
    %c0_i32 = arith.constant 0 : i32
    %c0_i32_0 = arith.constant 0 : i32
    return %arg0, %c0_i32 : i32, i32
  }
  func.func @transform_1(%arg0: i32) -> (i32, i32) {
    %c0_i32 = arith.constant 0 : i32
    %c0_i32_0 = arith.constant 0 : i32
    %c0_i32_1 = arith.constant 0 : i32
    return %c0_i32, %c0_i32_0 : i32, i32
  }
  func.func @transform_2(%arg0: i32) -> (i32, i32) {
    %c0_i32 = arith.constant 0 : i32
    %c0_i32_0 = arith.constant 0 : i32
    %c0_i32_1 = arith.constant 0 : i32
    return %c0_i32, %c0_i32_0 : i32, i32
  }
  func.func @transform_3(%arg0: i32) -> (i32, i32) {
    %c0_i32 = arith.constant 0 : i32
    %c0_i32_0 = arith.constant 0 : i32
    return %arg0, %c0_i32 : i32, i32
  }
}

</mosaic_0001>

<llo_original>
// kernel: tpu_custom_call.1
$region0: #{tpu_custom_call.1}
  #allocation0 [shape = 'u32[]', space=smem, size = 0x4, offset = 0x4, fixed_abs, tag = 'smem constant byte address 0x4 - core index']
  #allocation1 [shape = 'u32[144,128]{1,0:T(1,128)}', space=vmem, size = 0x12000, scoped, tag = 'internal scratch']
  %s0 = inlined_call_operand.hbm [shape: bf16[16,32], index: 0, kind: input, shape index: {}]
  %s1 = inlined_call_operand.hbm [shape: bf16[32,256], index: 1, kind: input, shape index: {}]
  %s2 = inlined_call_operand.vmem [shape: f32[1,256], index: 2, kind: input, shape index: {}]
  %s3 = inlined_call_operand.hbm [shape: f32[16,48], index: 3, kind: output, shape index: {}]
  %s4 = sld [smem:[#allocation0]]
  $region53: #{tpu_custom_call.1} parent=0
    _
  %s6 = ssub.s32 1, %s4
  %s7 = scalar_select 0, %s6, %s4
  $region1: #{tpu_custom_call.1} parent=0
    #allocation2 [shape = 'u8[4096]{0}', space=vmem, size = 0x1000, scoped, tag = 'input window, operand 0']
    #allocation3 [shape = 's32[2]{0}', space=sflag, size = 0x8, scoped, tag = 'scoped memory for tpu_custom_call.1']
    #allocation4 [shape = 's32[2]{0}', space=sflag, size = 0x8, scoped, tag = 'scoped memory for tpu_custom_call.1']
    #allocation5 [shape = 'u8[16384]{0}', space=vmem, size = 0x4000, scoped, tag = 'input window, operand 1, single buffered']
    #allocation6 [shape = 's32[1]{0}', space=sflag, size = 0x4, scoped, tag = 'scoped memory for tpu_custom_call.1']
    #allocation7 [shape = 'u8[8192]{0}', space=vmem, size = 0x2000, scoped, tag = 'output window, operand 0']
    %8 = vsyncpa [#allocation3], 0
    %s9 = scalar_lea.sflag [#allocation3], 1
    %10 = vsyncpa %s9, 0
    %11 = vsyncpa [#allocation6], 0
    %12 = vsyncpa [#allocation4], 0
    %s13 = scalar_lea.sflag [#allocation4], 1
    %14 = vsyncpa %s13, 0
    loop: start=0, step=1, limit=4
    $region2: #{tpu_custom_call.1} parent=1 // loop_pre_header
      _
    $region3: #{tpu_custom_call.1} parent=1 // loop_header
      %s16 = sphi 0, %s20
      %p17 = scmp.ge.s32.totalorder %s16, 4
      %s26 = sphi 0, %s28
      %s29 = sphi 0, %s26
      %s30 = sphi 0, %s29
      %s46 = sphi 0, %s30
      %s50 = sphi 0, %s50
      %s52 = sphi 0, %s50
      %s53 = sphi 0, %s52
      %s67 = sphi 0, %s53
      %s71 = sphi 0, %s71
      %s73 = sphi 0, %s71
      %s74 = sphi 0, %s73
      %s88 = sphi 0, %s74
      %s94 = sphi 0, %s96
      %s97 = sphi 0, %s94
      %s98 = sphi 0, %s97
      %s114 = sphi 0, %s98
    $region4: #{tpu_custom_call.1} parent=1 // loop_header_branch
      %19 = sbr.rel (%p17) target = $region8
    $region5: #{tpu_custom_call.1} parent=1 // loop_body
      %s21 = ssub.s32 %s16, 1
      %s22 = ssub.s32 %s16, 2
      %s23 = sadd.s32 %s16, 1
      %s24 = ssub.s32 %s16, %s23
      %p25 = scmp.eq.s32.totalorder %s24, 0
      %s27 = sadd.s32 %s26, 1
      %s28 = scalar_select %p25, %s26, %s27
      %p31 = pneg %p25
      %p32 = scmp.eq.s32.totalorder %s16, 1
      %p33 = por %p31, %p32
      %p34 = scmp.ne.s32.totalorder %s26, %s29
      %p35 = scmp.eq.s32.totalorder %s16, 0
      %p36 = por %p34, %p35
      %p37 = scmp.ne.s32.totalorder %s26, %s29
      %p38 = scmp.eq.s32.totalorder %s21, 1
      %p39 = por %p37, %p38
      %p40 = scmp.ne.s32.totalorder %s29, %s30
      %p41 = scmp.eq.s32.totalorder %s21, 0
      %p42 = por %p40, %p41
      %p43 = scmp.ne.s32.totalorder %s29, %s30
      %p44 = scmp.eq.s32.totalorder %s22, 1
      %p45 = por %p43, %p44
      %p47 = scmp.ne.s32.totalorder %s30, %s46
      %p48 = scmp.eq.s32.totalorder %s22, 0
      %p49 = por %p47, %p48
      %s51 = sadd.s32 %s50, 1
      %p54 = scmp.eq.s32.totalorder %s16, 1
      %p55 = scmp.ne.s32.totalorder %s50, %s52
      %p56 = scmp.eq.s32.totalorder %s16, 0
      %p57 = por %p55, %p56
      %p58 = scmp.ne.s32.totalorder %s50, %s52
      %p59 = scmp.eq.s32.totalorder %s21, 1
      %p60 = por %p58, %p59
      %p61 = scmp.ne.s32.totalorder %s52, %s53
      %p62 = scmp.eq.s32.totalorder %s21, 0
      %p63 = por %p61, %p62
      %p64 = scmp.ne.s32.totalorder %s52, %s53
      %p65 = scmp.eq.s32.totalorder %s22, 1
      %p66 = por %p64, %p65
      %p68 = scmp.ne.s32.totalorder %s53, %s67
      %p69 = scmp.eq.s32.totalorder %s22, 0
      %p70 = por %p68, %p69
      %s72 = sadd.s32 %s71, 1
      %p75 = scmp.eq.s32.totalorder %s16, 1
      %p76 = scmp.ne.s32.totalorder %s71, %s73
      %p77 = scmp.eq.s32.totalorder %s16, 0
      %p78 = por %p76, %p77
      %p79 = scmp.ne.s32.totalorder %s71, %s73
      %p80 = scmp.eq.s32.totalorder %s21, 1
      %p81 = por %p79, %p80
      %p82 = scmp.ne.s32.totalorder %s73, %s74
      %p83 = scmp.eq.s32.totalorder %s21, 0
      %p84 = por %p82, %p83
      %p85 = scmp.ne.s32.totalorder %s73, %s74
      %p86 = scmp.eq.s32.totalorder %s22, 1
      %p87 = por %p85, %p86
      %p89 = scmp.ne.s32.totalorder %s74, %s88
      %p90 = scmp.eq.s32.totalorder %s22, 0
      %p91 = por %p89, %p90
      %s92 = ssub.s32 %s16, %s23
      %p93 = scmp.eq.s32.totalorder %s92, 0
      %s95 = sadd.s32 %s94, 1
      %s96 = scalar_select %p93, %s94, %s95
      %p99 = pneg %p93
      %p100 = scmp.eq.s32.totalorder %s16, 1
      %p101 = por %p99, %p100
      %p102 = scmp.ne.s32.totalorder %s94, %s97
      %p103 = scmp.eq.s32.totalorder %s16, 0
      %p104 = por %p102, %p103
      %p105 = scmp.ne.s32.totalorder %s94, %s97
      %p106 = scmp.eq.s32.totalorder %s21, 1
      %p107 = por %p105, %p106
      %p108 = scmp.ne.s32.totalorder %s97, %s98
      %p109 = scmp.eq.s32.totalorder %s21, 0
      %p110 = por %p108, %p109
      %p111 = scmp.ne.s32.totalorder %s97, %s98
      %p112 = scmp.eq.s32.totalorder %s22, 1
      %p113 = por %p111, %p112
      %p115 = scmp.ne.s32.totalorder %s98, %s114
      %p116 = scmp.eq.s32.totalorder %s22, 0
      %p117 = por %p115, %p116
      %p118 = scmp.le.s32.totalorder 1, %s16
      %p119 = scmp.lt.s32.totalorder %s16, 3
      %p120 = pnand %p118, %p119
      %p121 = pneg %p120
      // Predicated region
      $region9: #{tpu_custom_call.1} parent=5 // pred_check
        _
      $region10: #{tpu_custom_call.1} parent=5 // pred_check_branch
        %123 = sbr.rel (%p120) target = $region12
      $region11: #{tpu_custom_call.1} parent=5 // pred_region
        %s124 = ssub.s32 %s16, 1
        // Predicated region
        $region13: #{tpu_custom_call.1} parent=11 // pred_check
          %p125 = pneg %p63
        $region14: #{tpu_custom_call.1} parent=11 // pred_check_branch
          %127 = sbr.rel (%p125) target = $region16
        $region15: #{tpu_custom_call.1} parent=11 // pred_region
          %s129 = ssub.s32 512, 512
          %130 = vsyncadd [#allocation6], %s129
          %s131 = sshll.u32 [#allocation5], 4
          %s132 = int_to_ptr.vmem [resolvable:$true] %s131
          %137 = dma.hbm_to_vmem [thread:$0]  %s1, 512, %s132, [#allocation6], 128, 128, 8
        $region16: #{tpu_custom_call.1} parent=11 // pred_fallthru
          _
        // Predicated region
        $region17: #{tpu_custom_call.1} parent=11 // pred_check
          %p138 = pneg %p84
        $region18: #{tpu_custom_call.1} parent=11 // pred_check_branch
          %140 = sbr.rel (%p138) target = $region20
        $region19: #{tpu_custom_call.1} parent=11 // pred_region
          _
        $region20: #{tpu_custom_call.1} parent=11 // pred_fallthru
          _
      $region12: #{tpu_custom_call.1} parent=5 // pred_fallthru
        _
      %p141 = scmp.lt.s32.totalorder %s16, 2
      // Predicated region
      $region21: #{tpu_custom_call.1} parent=5 // pred_check
        %p142 = pneg %p141
      $region22: #{tpu_custom_call.1} parent=5 // pred_check_branch
        %144 = sbr.rel (%p142) target = $region24
      $region23: #{tpu_custom_call.1} parent=5 // pred_region
        // Predicated region
        $region25: #{tpu_custom_call.1} parent=23 // pred_check
          %p145 = pneg %p36
        $region26: #{tpu_custom_call.1} parent=23 // pred_check_branch
          %147 = sbr.rel (%p145) target = $region28
        $region27: #{tpu_custom_call.1} parent=23 // pred_region
          %s148 = sand.u32 %s26, 1
          %s149 = scalar_lea.sflag [#allocation3], %s148
          %s150 = sand.u32 %s26, 1
          %s151 = smul.addr %s150, 4
          %s152 = scalar_lea.vmem [#allocation2], %s151
          %s154 = ssub.s32 64, 64
          %155 = vsyncadd %s149, %s154
          %s156 = smul.addr %s16, 64
          %s157 = scalar_lea.hbm %s0, %s156
          %s159 = sshll.u32 %s152, 4
          %s160 = int_to_ptr.vmem [resolvable:$true] %s159
          %162 = dma.hbm_to_vmem [thread:$0]  %s157, 64, %s160, %s149
        $region28: #{tpu_custom_call.1} parent=23 // pred_fallthru
          _
      $region24: #{tpu_custom_call.1} parent=5 // pred_fallthru
        _
      %p163 = scmp.le.s32.totalorder 1, %s16
      %p164 = scmp.lt.s32.totalorder %s16, 3
      %p165 = pnand %p163, %p164
      %p166 = pneg %p165
      // Predicated region
      $region29: #{tpu_custom_call.1} parent=5 // pred_check
        _
      $region30: #{tpu_custom_call.1} parent=5 // pred_check_branch
        %168 = sbr.rel (%p165) target = $region32
      $region31: #{tpu_custom_call.1} parent=5 // pred_region
        %s169 = ssub.s32 %s16, 1
        %s170 = sand.u32 %s29, 1
        %s171 = scalar_lea.sflag [#allocation3], %s170
        %s172 = sand.u32 %s29, 1
        %s173 = smul.addr %s172, 4
        %s174 = scalar_lea.vmem [#allocation2], %s173
        // Predicated region
        $region33: #{tpu_custom_call.1} parent=31 // pred_check
          %p175 = pneg %p42
        $region34: #{tpu_custom_call.1} parent=31 // pred_check_branch
          %177 = sbr.rel (%p175) target = $region36
        $region35: #{tpu_custom_call.1} parent=31 // pred_region
          %178 = dma.done %s171, 64
        $region36: #{tpu_custom_call.1} parent=31 // pred_fallthru
          _
        // Predicated region
        $region37: #{tpu_custom_call.1} parent=31 // pred_check
          %p179 = pneg %p63
        $region38: #{tpu_custom_call.1} parent=31 // pred_check_branch
          %181 = sbr.rel (%p179) target = $region40
        $region39: #{tpu_custom_call.1} parent=31 // pred_region
          %182 = dma.done [#allocation6], 512
        $region40: #{tpu_custom_call.1} parent=31 // pred_fallthru
          _
        %s183 = sand.u32 %s29, 1
        %s184 = scalar_lea.sflag [#allocation3], %s183
        %s185 = sand.u32 %s29, 1
        %s186 = smul.addr %s185, 4
        %s187 = scalar_lea.vmem [#allocation2], %s186
        %p188 = pneg %p42
        %p189 = pneg %p39
        %p190 = pneg %p63
        %p191 = pneg %p60
        %p192 = pneg %p84
        %p193 = pneg %p81
        %p194 = pneg %p110
        %p195 = pneg %p107
        %s196 = sand.u32 %s97, 1
        %s197 = scalar_lea.sflag [#allocation4], %s196
        %s198 = sand.u32 %s97, 1
        %s199 = smul.addr %s198, 8
        %s200 = scalar_lea.vmem [#allocation7], %s199
        %v202 = vld [vmem:[%s174] sm:$0xf]
        %v203 = vld [vmem:[#allocation5] sm:$0xff]
        %v204 = vld [vmem:[#allocation5 + $0x8] sm:$0xff]
        %v205 = vld [vmem:[#allocation5 + $0x10] sm:$0xff]
        %v206 = vld [vmem:[#allocation5 + $0x18] sm:$0xff]
        %v207 = vld [vmem:[%s2] sm:$0x3]
        %v209 = vlaneseq
        %v210 = vshrl.u32 %v209, 7
        %v211 = vsub.s32 0, %v210
        %v212 = vrot.slane %v207, %v211
        %v213 = vlaneseq
        %v214 = vshrl.u32 %v213, 7
        %v215 = vsub.s32 1, %v214
        %v216 = vrot.slane %v207, %v215
        %v223 = vunpack.c.l.b16 %v203
        %v224 = vunpack.c.h.b16 %v203
        %v225 = vunpack.c.l.b16 %v204
        %v226 = vunpack.c.h.b16 %v204
        %v227 = vunpack.c.l.b16 %v205
        %v228 = vunpack.c.h.b16 %v205
        %v229 = vunpack.c.l.b16 %v206
        %v230 = vunpack.c.h.b16 %v206
        %v231 = vpack.c.b16 %v225, %v223
        %v232 = vpack.c.b16 %v226, %v224
        %v233 = vpack.c.b16 %v229, %v227
        %v234 = vpack.c.b16 %v230, %v228
        %vm239 = vcmask 261120
        %v241 = vsel %vm239, %v202, 0
        %243 = vmatprep.subr.bf16.mxu0 0
        %244 = vmatpush1.bf16.msra.mxu0 0
        %245 = vmatprep.subr.bf16.mxu0 0
        %246 = vmatpush1.bf16.msra.mxu0 0
        %247 = vmatprep.subr.bf16.mxu0 0
        %248 = vmatpush1.bf16.msra.mxu0 0
        %249 = vmatprep.subr.bf16.mxu0 0
        %250 = vmatpush1.bf16.msra.mxu0 0
        %251 = vmatprep.subr.bf16.mxu0 0
        %252 = vmatpush1.bf16.msra.mxu0 0
        %253 = vmatprep.subr.bf16.mxu0 0
        %254 = vmatpush1.bf16.msra.mxu0 0
        %255 = vmatprep.subr.bf16.mxu0 %v234
        %256 = vmatpush1.bf16.msra.mxu0 %v233
        %257 = vmatprep.subr.bf16.mxu0 %v232
        %258 = vmatpush1.bf16.msra.mxu0 %v231
        %259 = vmatprep.subr.bf16.mxu0 0
        %260 = vmatpush2.bf16.msra.mxu0 0
        %261 = vmatprep.subr.bf16.mxu0 0
        %262 = vmatpush2.bf16.msra.mxu0 0
        %263 = vmatprep.subr.bf16.mxu0 0
        %264 = vmatpush2.bf16.msra.mxu0 0
        %265 = vmatprep.subr.bf16.mxu0 0
        %266 = vmatpush2.bf16.msra.mxu0 0
        %267 = vmatprep.subr.bf16.mxu0 0
        %268 = vmatpush2.bf16.msra.mxu0 0
        %269 = vmatprep.subr.bf16.mxu0 0
        %270 = vmatpush2.bf16.msra.mxu0 0
        %271 = vmatprep.subr.bf16.mxu0 0
        %272 = vmatpush2.bf16.msra.mxu0 0
        %273 = vmatprep.subr.bf16.mxu0 0
        %274 = vmatpush2.bf16.msra.mxu0 0
        %275 = vmatprep.mubr.bf16.mxu0 0
        %276 = vmatmul.mubr.bf16.gmra.mxu0 %v241
        %v277 = vpop.f32.mrf.mxu0
        %v278 = vadd.f32 %v212, %v277
        %v279 = vpop.f32.mrf.mxu0
        %v280 = vadd.f32 %v216, %v279
        %v281 = vpop.f32.mrf.mxu0
        %v282 = vpop.f32.mrf.mxu0
        %283 = vdwg.mxu0
        %v284 = vpack.c.bf16 %v278, %v278
        %286 = vrot.lane.b32.xlu0 %v284, 96
        %v287 = vpop.permute.xlu0 %286
        %vm288 = vcmask 130048
        %v290 = vsel %vm288, %v284, 0
        %v293 = vsel %vm288, %v287, 0
        %295 = vmatprep.subr.bf16.mxu0 0
        %296 = vmatpush1.bf16.xpose.msra.mxu0 0
        %297 = vmatprep.subr.bf16.mxu0 0
        %298 = vmatpush1.bf16.xpose.msra.mxu0 0
        %299 = vmatprep.subr.bf16.mxu0 0
        %300 = vmatpush1.bf16.xpose.msra.mxu0 0
        %301 = vmatprep.subr.bf16.mxu0 0
        %302 = vmatpush1.bf16.xpose.msra.mxu0 0
        %303 = vmatprep.subr.bf16.mxu0 0
        %304 = vmatpush1.bf16.xpose.msra.mxu0 0
        %305 = vmatprep.subr.bf16.mxu0 0
        %306 = vmatpush1.bf16.xpose.msra.mxu0 0
        %307 = vmatprep.subr.bf16.mxu0 0
        %308 = vmatpush1.bf16.xpose.msra.mxu0 0
        %309 = vmatprep.subr.bf16.mxu0 0
        %310 = vmatpush1.bf16.xpose.msra.mxu0 %v293
        %311 = vmatprep.subr.bf16.mxu0 0
        %312 = vmatpush2.bf16.xpose.msra.mxu0 0
        %313 = vmatprep.subr.bf16.mxu0 0
        %314 = vmatpush2.bf16.xpose.msra.mxu0 0
        %315 = vmatprep.subr.bf16.mxu0 0
        %316 = vmatpush2.bf16.xpose.msra.mxu0 0
        %317 = vmatprep.subr.bf16.mxu0 0
        %318 = vmatpush2.bf16.xpose.msra.mxu0 0
        %319 = vmatprep.subr.bf16.mxu0 0
        %320 = vmatpush2.bf16.xpose.msra.mxu0 0
        %321 = vmatprep.subr.bf16.mxu0 0
        %322 = vmatpush2.bf16.xpose.msra.mxu0 0
        %323 = vmatprep.subr.bf16.mxu0 0
        %324 = vmatpush2.bf16.xpose.msra.mxu0 0
        %325 = vmatprep.subr.bf16.mxu0 0
        %326 = vmatpush2.bf16.xpose.msra.mxu0 0
        %327 = vmatprep.mubr.bf16.mxu0 0
        %328 = vmatmul.mubr.bf16.gmra.mxu0 %v290
        %v329 = vpop.f32.mrf.mxu0
        %v330 = vadd.f32 0.0, %v329
        %v331 = vpop.f32.mrf.mxu0
        %v332 = vpop.f32.mrf.mxu0
        %v333 = vpop.f32.mrf.mxu0
        %334 = vdwg.mxu0
        %vm335 = vcmask 64512
        %v336 = vsel %vm335, %v330, -inf
        %337 = vmax.xlane.f32.xlu0 %v336
        %v338 = vpop.xlane.xlu0 %337
        %v339 = vsub.f32 %v330, %v338
        %v340 = vmul.f32 %v339, 1.442695
        %v341 = vpow.pop %v340
        %v342 = vsel %vm335, %v341, 0.0
        %343 = vadd.xlane.f32.xlu0 %v342
        %v344 = vpop.xlane.xlu0 %343
        %v345 = vrcp.pop %v344
        %v346 = vmul.f32 %v345, 0.5
        %v347 = vmul.f32 %v341, %v346
        %v348 = vpack.c.bf16 %v347, %v347
        %349 = vxpose.xlu0.c.b16.start [1/8] %v348, 128
        %350 = vxpose.xlu0.c.b16.cont [2/8] 0, 128
        %351 = vxpose.xlu0.c.b16.cont [3/8] 0, 128
        %352 = vxpose.xlu0.c.b16.cont [4/8] 0, 128
        %353 = vxpose.xlu0.c.b16.cont [5/8] 0, 128
        %354 = vxpose.xlu0.c.b16.cont [6/8] 0, 128
        %355 = vxpose.xlu0.c.b16.cont [7/8] 0, 128
        %356 = vxpose.xlu0.c.b16.end [8/8] 0, 128
        %v357 = vpop.trf.xlu0
        %v358 = vpop.trf.xlu0
        %v359 = vpop.trf.xlu0
        %v360 = vpop.trf.xlu0
        %v361 = vpop.trf.xlu0
        %v362 = vpop.trf.xlu0
        %v363 = vpop.trf.xlu0
        %v364 = vpop.trf.xlu0
        %365 = vrot.lane.b32.xlu0 %v284, 64
        %v366 = vpop.permute.xlu0 %365
        %v368 = vsel %vm335, %v357, 0
        %vm370 = vcmask 1043456
        %v372 = vsel %vm370, %v366, 0
        %374 = vmatprep.subr.bf16.mxu0 0
        %375 = vmatpush1.bf16.msra.mxu0 0
        %376 = vmatprep.subr.bf16.mxu0 0
        %377 = vmatpush1.bf16.msra.mxu0 0
        %378 = vmatprep.subr.bf16.mxu0 0
        %379 = vmatpush1.bf16.msra.mxu0 0
        %380 = vmatprep.subr.bf16.mxu0 0
        %381 = vmatpush1.bf16.msra.mxu0 0
        %382 = vmatprep.subr.bf16.mxu0 0
        %383 = vmatpush1.bf16.msra.mxu0 0
        %384 = vmatprep.subr.bf16.mxu0 0
        %385 = vmatpush1.bf16.msra.mxu0 0
        %386 = vmatprep.subr.bf16.mxu0 0
        %387 = vmatpush1.bf16.msra.mxu0 0
        %388 = vmatprep.subr.bf16.mxu0 0
        %389 = vmatpush1.bf16.msra.mxu0 %v372
        %390 = vmatprep.subr.bf16.mxu0 0
        %391 = vmatpush2.bf16.msra.mxu0 0
        %392 = vmatprep.subr.bf16.mxu0 0
        %393 = vmatpush2.bf16.msra.mxu0 0
        %394 = vmatprep.subr.bf16.mxu0 0
        %395 = vmatpush2.bf16.msra.mxu0 0
        %396 = vmatprep.subr.bf16.mxu0 0
        %397 = vmatpush2.bf16.msra.mxu0 0
        %398 = vmatprep.subr.bf16.mxu0 0
        %399 = vmatpush2.bf16.msra.mxu0 0
        %400 = vmatprep.subr.bf16.mxu0 0
        %401 = vmatpush2.bf16.msra.mxu0 0
        %402 = vmatprep.subr.bf16.mxu0 0
        %403 = vmatpush2.bf16.msra.mxu0 0
        %404 = vmatprep.subr.bf16.mxu0 0
        %405 = vmatpush2.bf16.msra.mxu0 0
        %406 = vmatprep.mubr.bf16.mxu0 0
        %407 = vmatmul.mubr.bf16.gmra.mxu0 %v368
        %v408 = vpop.f32.mrf.mxu0
        %v409 = vadd.f32 0.0, %v408
        %v410 = vpop.f32.mrf.mxu0
        %v411 = vpop.f32.mrf.mxu0
        %v412 = vpop.f32.mrf.mxu0
        %413 = vdwg.mxu0
        %414 = vrot.lane.b32.xlu0 %v284, 112
        %v415 = vpop.permute.xlu0 %414
        %416 = vrot.lane.b32.xlu0 %v284, 80
        %v417 = vpop.permute.xlu0 %416
        %v419 = vsel %vm288, %v415, 0
        %v422 = vsel %vm288, %v417, 0
        %424 = vmatprep.subr.bf16.mxu0 0
        %425 = vmatpush1.bf16.xpose.msra.mxu0 0
        %426 = vmatprep.subr.bf16.mxu0 0
        %427 = vmatpush1.bf16.xpose.msra.mxu0 0
        %428 = vmatprep.subr.bf16.mxu0 0
        %429 = vmatpush1.bf16.xpose.msra.mxu0 0
        %430 = vmatprep.subr.bf16.mxu0 0
        %431 = vmatpush1.bf16.xpose.msra.mxu0 0
        %432 = vmatprep.subr.bf16.mxu0 0
        %433 = vmatpush1.bf16.xpose.msra.mxu0 0
        %434 = vmatprep.subr.bf16.mxu0 0
        %435 = vmatpush1.bf16.xpose.msra.mxu0 0
        %436 = vmatprep.subr.bf16.mxu0 0
        %437 = vmatpush1.bf16.xpose.msra.mxu0 0
        %438 = vmatprep.subr.bf16.mxu0 0
        %439 = vmatpush1.bf16.xpose.msra.mxu0 %v422
        %440 = vmatprep.subr.bf16.mxu0 0
        %441 = vmatpush2.bf16.xpose.msra.mxu0 0
        %442 = vmatprep.subr.bf16.mxu0 0
        %443 = vmatpush2.bf16.xpose.msra.mxu0 0
        %444 = vmatprep.subr.bf16.mxu0 0
        %445 = vmatpush2.bf16.xpose.msra.mxu0 0
        %446 = vmatprep.subr.bf16.mxu0 0
        %447 = vmatpush2.bf16.xpose.msra.mxu0 0
        %448 = vmatprep.subr.bf16.mxu0 0
        %449 = vmatpush2.bf16.xpose.msra.mxu0 0
        %450 = vmatprep.subr.bf16.mxu0 0
        %451 = vmatpush2.bf16.xpose.msra.mxu0 0
        %452 = vmatprep.subr.bf16.mxu0 0
        %453 = vmatpush2.bf16.xpose.msra.mxu0 0
        %454 = vmatprep.subr.bf16.mxu0 0
        %455 = vmatpush2.bf16.xpose.msra.mxu0 0
        %456 = vmatprep.mubr.bf16.mxu0 0
        %457 = vmatmul.mubr.bf16.gmra.mxu0 %v419
        %v458 = vpop.f32.mrf.mxu0
        %v459 = vadd.f32 0.0, %v458
        %v460 = vpop.f32.mrf.mxu0
        %v461 = vpop.f32.mrf.mxu0
        %v462 = vpop.f32.mrf.mxu0
        %463 = vdwg.mxu0
        %v464 = vsel %vm335, %v459, -inf
        %465 = vmax.xlane.f32.xlu0 %v464
        %v466 = vpop.xlane.xlu0 %465
        %v467 = vsub.f32 %v459, %v466
        %v468 = vmul.f32 %v467, 1.442695
        %v469 = vpow.pop %v468
        %v470 = vsel %vm335, %v469, 0.0
        %471 = vadd.xlane.f32.xlu0 %v470
        %v472 = vpop.xlane.xlu0 %471
        %v473 = vrcp.pop %v472
        %v474 = vmul.f32 %v473, 0.5
        %v475 = vmul.f32 %v469, %v474
        %v476 = vpack.c.bf16 %v475, %v475
        %477 = vxpose.xlu0.c.b16.start [1/8] %v476, 128
        %478 = vxpose.xlu0.c.b16.cont [2/8] 0, 128
        %479 = vxpose.xlu0.c.b16.cont [3/8] 0, 128
        %480 = vxpose.xlu0.c.b16.cont [4/8] 0, 128
        %481 = vxpose.xlu0.c.b16.cont [5/8] 0, 128
        %482 = vxpose.xlu0.c.b16.cont [6/8] 0, 128
        %483 = vxpose.xlu0.c.b16.cont [7/8] 0, 128
        %484 = vxpose.xlu0.c.b16.end [8/8] 0, 128
        %v485 = vpop.trf.xlu0
        %v486 = vpop.trf.xlu0
        %v487 = vpop.trf.xlu0
        %v488 = vpop.trf.xlu0
        %v489 = vpop.trf.xlu0
        %v490 = vpop.trf.xlu0
        %v491 = vpop.trf.xlu0
        %v492 = vpop.trf.xlu0
        %493 = vrot.lane.b32.xlu0 %v284, 48
        %v494 = vpop.permute.xlu0 %493
        %v496 = vsel %vm335, %v485, 0
        %v499 = vsel %vm370, %v494, 0
        %501 = vmatprep.subr.bf16.mxu0 0
        %502 = vmatpush1.bf16.msra.mxu0 0
        %503 = vmatprep.subr.bf16.mxu0 0
        %504 = vmatpush1.bf16.msra.mxu0 0
        %505 = vmatprep.subr.bf16.mxu0 0
        %506 = vmatpush1.bf16.msra.mxu0 0
        %507 = vmatprep.subr.bf16.mxu0 0
        %508 = vmatpush1.bf16.msra.mxu0 0
        %509 = vmatprep.subr.bf16.mxu0 0
        %510 = vmatpush1.bf16.msra.mxu0 0
        %511 = vmatprep.subr.bf16.mxu0 0
        %512 = vmatpush1.bf16.msra.mxu0 0
        %513 = vmatprep.subr.bf16.mxu0 0
        %514 = vmatpush1.bf16.msra.mxu0 0
        %515 = vmatprep.subr.bf16.mxu0 0
        %516 = vmatpush1.bf16.msra.mxu0 %v499
        %517 = vmatprep.subr.bf16.mxu0 0
        %518 = vmatpush2.bf16.msra.mxu0 0
        %519 = vmatprep.subr.bf16.mxu0 0
        %520 = vmatpush2.bf16.msra.mxu0 0
        %521 = vmatprep.subr.bf16.mxu0 0
        %522 = vmatpush2.bf16.msra.mxu0 0
        %523 = vmatprep.subr.bf16.mxu0 0
        %524 = vmatpush2.bf16.msra.mxu0 0
        %525 = vmatprep.subr.bf16.mxu0 0
        %526 = vmatpush2.bf16.msra.mxu0 0
        %527 = vmatprep.subr.bf16.mxu0 0
        %528 = vmatpush2.bf16.msra.mxu0 0
        %529 = vmatprep.subr.bf16.mxu0 0
        %530 = vmatpush2.bf16.msra.mxu0 0
        %531 = vmatprep.subr.bf16.mxu0 0
        %532 = vmatpush2.bf16.msra.mxu0 0
        %533 = vmatprep.mubr.bf16.mxu0 0
        %534 = vmatmul.mubr.bf16.gmra.mxu0 %v496
        %v535 = vpop.f32.mrf.mxu0
        %v536 = vadd.f32 0.0, %v535
        %v537 = vpop.f32.mrf.mxu0
        %v538 = vpop.f32.mrf.mxu0
        %v539 = vpop.f32.mrf.mxu0
        %540 = vdwg.mxu0
        %542 = vrot.lane.b32.xlu0 %v475, 8
        %v543 = vpop.permute.xlu0 %542
        %546 = vrot.lane.b32.xlu0 %v409, 16
        %v547 = vpop.permute.xlu0 %546
        %550 = vrot.lane.b32.xlu0 %v536, 32
        %v551 = vpop.permute.xlu0 %550
        %v553 = vsel %vm335, %v347, %v543
        %v554 = vsel %vm288, %v553, %v547
        %v555 = vsel %vm239, %v554, %v551
        %vm556 = vcmask 392192
        %557 = vst.msk [vmem:[%s200] sm:$0xff] %vm556, %v555
        %v558 = vpack.c.bf16 %v280, %v280
        %560 = vrot.lane.b32.xlu0 %v558, 96
        %v561 = vpop.permute.xlu0 %560
        %v563 = vsel %vm288, %v558, 0
        %v566 = vsel %vm288, %v561, 0
        %568 = vmatprep.subr.bf16.mxu0 0
        %569 = vmatpush1.bf16.xpose.msra.mxu0 0
        %570 = vmatprep.subr.bf16.mxu0 0
        %571 = vmatpush1.bf16.xpose.msra.mxu0 0
        %572 = vmatprep.subr.bf16.mxu0 0
        %573 = vmatpush1.bf16.xpose.msra.mxu0 0
        %574 = vmatprep.subr.bf16.mxu0 0
        %575 = vmatpush1.bf16.xpose.msra.mxu0 0
        %576 = vmatprep.subr.bf16.mxu0 0
        %577 = vmatpush1.bf16.xpose.msra.mxu0 0
        %578 = vmatprep.subr.bf16.mxu0 0
        %579 = vmatpush1.bf16.xpose.msra.mxu0 0
        %580 = vmatprep.subr.bf16.mxu0 0
        %581 = vmatpush1.bf16.xpose.msra.mxu0 0
        %582 = vmatprep.subr.bf16.mxu0 0
        %583 = vmatpush1.bf16.xpose.msra.mxu0 %v566
        %584 = vmatprep.subr.bf16.mxu0 0
        %585 = vmatpush2.bf16.xpose.msra.mxu0 0
        %586 = vmatprep.subr.bf16.mxu0 0
        %587 = vmatpush2.bf16.xpose.msra.mxu0 0
        %588 = vmatprep.subr.bf16.mxu0 0
        %589 = vmatpush2.bf16.xpose.msra.mxu0 0
        %590 = vmatprep.subr.bf16.mxu0 0
        %591 = vmatpush2.bf16.xpose.msra.mxu0 0
        %592 = vmatprep.subr.bf16.mxu0 0
        %593 = vmatpush2.bf16.xpose.msra.mxu0 0
        %594 = vmatprep.subr.bf16.mxu0 0
        %595 = vmatpush2.bf16.xpose.msra.mxu0 0
        %596 = vmatprep.subr.bf16.mxu0 0
        %597 = vmatpush2.bf16.xpose.msra.mxu0 0
        %598 = vmatprep.subr.bf16.mxu0 0
        %599 = vmatpush2.bf16.xpose.msra.mxu0 0
        %600 = vmatprep.mubr.bf16.mxu0 0
        %601 = vmatmul.mubr.bf16.gmra.mxu0 %v563
        %v602 = vpop.f32.mrf.mxu0
        %v603 = vadd.f32 0.0, %v602
        %v604 = vpop.f32.mrf.mxu0
        %v605 = vpop.f32.mrf.mxu0
        %v606 = vpop.f32.mrf.mxu0
        %607 = vdwg.mxu0
        %v608 = vsel %vm335, %v603, -inf
        %609 = vmax.xlane.f32.xlu0 %v608
        %v610 = vpop.xlane.xlu0 %609
        %v611 = vsub.f32 %v603, %v610
        %v612 = vmul.f32 %v611, 1.442695
        %v613 = vpow.pop %v612
        %v614 = vsel %vm335, %v613, 0.0
        %615 = vadd.xlane.f32.xlu0 %v614
        %v616 = vpop.xlane.xlu0 %615
        %v617 = vrcp.pop %v616
        %v618 = vmul.f32 %v617, 0.5
        %v619 = vmul.f32 %v613, %v618
        %v620 = vpack.c.bf16 %v619, %v619
        %621 = vxpose.xlu0.c.b16.start [1/8] %v620, 128
        %622 = vxpose.xlu0.c.b16.cont [2/8] 0, 128
        %623 = vxpose.xlu0.c.b16.cont [3/8] 0, 128
        %624 = vxpose.xlu0.c.b16.cont [4/8] 0, 128
        %625 = vxpose.xlu0.c.b16.cont [5/8] 0, 128
        %626 = vxpose.xlu0.c.b16.cont [6/8] 0, 128
        %627 = vxpose.xlu0.c.b16.cont [7/8] 0, 128
        %628 = vxpose.xlu0.c.b16.end [8/8] 0, 128
        %v629 = vpop.trf.xlu0
        %v630 = vpop.trf.xlu0
        %v631 = vpop.trf.xlu0
        %v632 = vpop.trf.xlu0
        %v633 = vpop.trf.xlu0
        %v634 = vpop.trf.xlu0
        %v635 = vpop.trf.xlu0
        %v636 = vpop.trf.xlu0
        %637 = vrot.lane.b32.xlu0 %v558, 64
        %v638 = vpop.permute.xlu0 %637
        %v640 = vsel %vm335, %v629, 0
        %v643 = vsel %vm370, %v638, 0
        %645 = vmatprep.subr.bf16.mxu0 0
        %646 = vmatpush1.bf16.msra.mxu0 0
        %647 = vmatprep.subr.bf16.mxu0 0
        %648 = vmatpush1.bf16.msra.mxu0 0
        %649 = vmatprep.subr.bf16.mxu0 0
        %650 = vmatpush1.bf16.msra.mxu0 0
        %651 = vmatprep.subr.bf16.mxu0 0
        %652 = vmatpush1.bf16.msra.mxu0 0
        %653 = vmatprep.subr.bf16.mxu0 0
        %654 = vmatpush1.bf16.msra.mxu0 0
        %655 = vmatprep.subr.bf16.mxu0 0
        %656 = vmatpush1.bf16.msra.mxu0 0
        %657 = vmatprep.subr.bf16.mxu0 0
        %658 = vmatpush1.bf16.msra.mxu0 0
        %659 = vmatprep.subr.bf16.mxu0 0
        %660 = vmatpush1.bf16.msra.mxu0 %v643
        %661 = vmatprep.subr.bf16.mxu0 0
        %662 = vmatpush2.bf16.msra.mxu0 0
        %663 = vmatprep.subr.bf16.mxu0 0
        %664 = vmatpush2.bf16.msra.mxu0 0
        %665 = vmatprep.subr.bf16.mxu0 0
        %666 = vmatpush2.bf16.msra.mxu0 0
        %667 = vmatprep.subr.bf16.mxu0 0
        %668 = vmatpush2.bf16.msra.mxu0 0
        %669 = vmatprep.subr.bf16.mxu0 0
        %670 = vmatpush2.bf16.msra.mxu0 0
        %671 = vmatprep.subr.bf16.mxu0 0
        %672 = vmatpush2.bf16.msra.mxu0 0
        %673 = vmatprep.subr.bf16.mxu0 0
        %674 = vmatpush2.bf16.msra.mxu0 0
        %675 = vmatprep.subr.bf16.mxu0 0
        %676 = vmatpush2.bf16.msra.mxu0 0
        %677 = vmatprep.mubr.bf16.mxu0 0
        %678 = vmatmul.mubr.bf16.gmra.mxu0 %v640
        %v679 = vpop.f32.mrf.mxu0
        %v680 = vadd.f32 0.0, %v679
        %v681 = vpop.f32.mrf.mxu0
        %v682 = vpop.f32.mrf.mxu0
        %v683 = vpop.f32.mrf.mxu0
        %684 = vdwg.mxu0
        %685 = vrot.lane.b32.xlu0 %v558, 112
        %v686 = vpop.permute.xlu0 %685
        %687 = vrot.lane.b32.xlu0 %v558, 80
        %v688 = vpop.permute.xlu0 %687
        %v690 = vsel %vm288, %v686, 0
        %v693 = vsel %vm288, %v688, 0
        %695 = vmatprep.subr.bf16.mxu0 0
        %696 = vmatpush1.bf16.xpose.msra.mxu0 0
        %697 = vmatprep.subr.bf16.mxu0 0
        %698 = vmatpush1.bf16.xpose.msra.mxu0 0
        %699 = vmatprep.subr.bf16.mxu0 0
        %700 = vmatpush1.bf16.xpose.msra.mxu0 0
        %701 = vmatprep.subr.bf16.mxu0 0
        %702 = vmatpush1.bf16.xpose.msra.mxu0 0
        %703 = vmatprep.subr.bf16.mxu0 0
        %704 = vmatpush1.bf16.xpose.msra.mxu0 0
        %705 = vmatprep.subr.bf16.mxu0 0
        %706 = vmatpush1.bf16.xpose.msra.mxu0 0
        %707 = vmatprep.subr.bf16.mxu0 0
        %708 = vmatpush1.bf16.xpose.msra.mxu0 0
        %709 = vmatprep.subr.bf16.mxu0 0
        %710 = vmatpush1.bf16.xpose.msra.mxu0 %v693
        %711 = vmatprep.subr.bf16.mxu0 0
        %712 = vmatpush2.bf16.xpose.msra.mxu0 0
        %713 = vmatprep.subr.bf16.mxu0 0
        %714 = vmatpush2.bf16.xpose.msra.mxu0 0
        %715 = vmatprep.subr.bf16.mxu0 0
        %716 = vmatpush2.bf16.xpose.msra.mxu0 0
        %717 = vmatprep.subr.bf16.mxu0 0
        %718 = vmatpush2.bf16.xpose.msra.mxu0 0
        %719 = vmatprep.subr.bf16.mxu0 0
        %720 = vmatpush2.bf16.xpose.msra.mxu0 0
        %721 = vmatprep.subr.bf16.mxu0 0
        %722 = vmatpush2.bf16.xpose.msra.mxu0 0
        %723 = vmatprep.subr.bf16.mxu0 0
        %724 = vmatpush2.bf16.xpose.msra.mxu0 0
        %725 = vmatprep.subr.bf16.mxu0 0
        %726 = vmatpush2.bf16.xpose.msra.mxu0 0
        %727 = vmatprep.mubr.bf16.mxu0 0
        %728 = vmatmul.mubr.bf16.gmra.mxu0 %v690
        %v729 = vpop.f32.mrf.mxu0
        %v730 = vadd.f32 0.0, %v729
        %v731 = vpop.f32.mrf.mxu0
        %v732 = vpop.f32.mrf.mxu0
        %v733 = vpop.f32.mrf.mxu0
        %734 = vdwg.mxu0
        %v735 = vsel %vm335, %v730, -inf
        %736 = vmax.xlane.f32.xlu0 %v735
        %v737 = vpop.xlane.xlu0 %736
        %v738 = vsub.f32 %v730, %v737
        %v739 = vmul.f32 %v738, 1.442695
        %v740 = vpow.pop %v739
        %v741 = vsel %vm335, %v740, 0.0
        %742 = vadd.xlane.f32.xlu0 %v741
        %v743 = vpop.xlane.xlu0 %742
        %v744 = vrcp.pop %v743
        %v745 = vmul.f32 %v744, 0.5
        %v746 = vmul.f32 %v740, %v745
        %v747 = vpack.c.bf16 %v746, %v746
        %748 = vxpose.xlu0.c.b16.start [1/8] %v747, 128
        %749 = vxpose.xlu0.c.b16.cont [2/8] 0, 128
        %750 = vxpose.xlu0.c.b16.cont [3/8] 0, 128
        %751 = vxpose.xlu0.c.b16.cont [4/8] 0, 128
        %752 = vxpose.xlu0.c.b16.cont [5/8] 0, 128
        %753 = vxpose.xlu0.c.b16.cont [6/8] 0, 128
        %754 = vxpose.xlu0.c.b16.cont [7/8] 0, 128
        %755 = vxpose.xlu0.c.b16.end [8/8] 0, 128
        %v756 = vpop.trf.xlu0
        %v757 = vpop.trf.xlu0
        %v758 = vpop.trf.xlu0
        %v759 = vpop.trf.xlu0
        %v760 = vpop.trf.xlu0
        %v761 = vpop.trf.xlu0
        %v762 = vpop.trf.xlu0
        %v763 = vpop.trf.xlu0
        %764 = vrot.lane.b32.xlu0 %v558, 48
        %v765 = vpop.permute.xlu0 %764
        %v767 = vsel %vm335, %v756, 0
        %v770 = vsel %vm370, %v765, 0
        %772 = vmatprep.subr.bf16.mxu0 0
        %773 = vmatpush1.bf16.msra.mxu0 0
        %774 = vmatprep.subr.bf16.mxu0 0
        %775 = vmatpush1.bf16.msra.mxu0 0
        %776 = vmatprep.subr.bf16.mxu0 0
        %777 = vmatpush1.bf16.msra.mxu0 0
        %778 = vmatprep.subr.bf16.mxu0 0
        %779 = vmatpush1.bf16.msra.mxu0 0
        %780 = vmatprep.subr.bf16.mxu0 0
        %781 = vmatpush1.bf16.msra.mxu0 0
        %782 = vmatprep.subr.bf16.mxu0 0
        %783 = vmatpush1.bf16.msra.mxu0 0
        %784 = vmatprep.subr.bf16.mxu0 0
        %785 = vmatpush1.bf16.msra.mxu0 0
        %786 = vmatprep.subr.bf16.mxu0 0
        %787 = vmatpush1.bf16.msra.mxu0 %v770
        %788 = vmatprep.subr.bf16.mxu0 0
        %789 = vmatpush2.bf16.msra.mxu0 0
        %790 = vmatprep.subr.bf16.mxu0 0
        %791 = vmatpush2.bf16.msra.mxu0 0
        %792 = vmatprep.subr.bf16.mxu0 0
        %793 = vmatpush2.bf16.msra.mxu0 0
        %794 = vmatprep.subr.bf16.mxu0 0
        %795 = vmatpush2.bf16.msra.mxu0 0
        %796 = vmatprep.subr.bf16.mxu0 0
        %797 = vmatpush2.bf16.msra.mxu0 0
        %798 = vmatprep.subr.bf16.mxu0 0
        %799 = vmatpush2.bf16.msra.mxu0 0
        %800 = vmatprep.subr.bf16.mxu0 0
        %801 = vmatpush2.bf16.msra.mxu0 0
        %802 = vmatprep.subr.bf16.mxu0 0
        %803 = vmatpush2.bf16.msra.mxu0 0
        %804 = vmatprep.mubr.bf16.mxu0 0
        %805 = vmatmul.mubr.bf16.gmra.mxu0 %v767
        %v806 = vpop.f32.mrf.mxu0
        %v807 = vadd.f32 0.0, %v806
        %v808 = vpop.f32.mrf.mxu0
        %v809 = vpop.f32.mrf.mxu0
        %v810 = vpop.f32.mrf.mxu0
        %811 = vdwg.mxu0
        %813 = vrot.lane.b32.xlu0 %v746, 8
        %v814 = vpop.permute.xlu0 %813
        %817 = vrot.lane.b32.xlu0 %v680, 16
        %v818 = vpop.permute.xlu0 %817
        %821 = vrot.lane.b32.xlu0 %v807, 32
        %v822 = vpop.permute.xlu0 %821
        %v824 = vsel %vm335, %v619, %v814
        %v825 = vsel %vm288, %v824, %v818
        %v826 = vsel %vm239, %v825, %v822
        %v827 = vld [vmem:[%s200] sm:$0xff]
        %v828 = vadd.f32 %v827, %v826
        %829 = vst.msk [vmem:[%s200] sm:$0xff] %vm556, %v828
        %s830 = sand.u32 %s97, 1
        %s831 = scalar_lea.sflag [#allocation4], %s830
        %s832 = sand.u32 %s97, 1
        %s833 = smul.addr %s832, 8
        %s834 = scalar_lea.vmem [#allocation7], %s833
        // Predicated region
        $region41: #{tpu_custom_call.1} parent=31 // pred_check
          %p835 = pneg %p107
        $region42: #{tpu_custom_call.1} parent=31 // pred_check_branch
          %837 = sbr.rel (%p835) target = $region44
        $region43: #{tpu_custom_call.1} parent=31 // pred_region
          %s839 = ssub.s32 128, 128
          %840 = vsyncadd %s831, %s839
          %s841 = smul.addr %s21, 128
          %s842 = scalar_lea.hbm %s3, %s841
          %s844 = sshll.u32 %s834, 4
          %s845 = int_to_ptr.vmem [resolvable:$true] %s844
          %847 = dma.vmem_to_hbm [thread:$0]  %s845, 128, %s842, %s831
        $region44: #{tpu_custom_call.1} parent=31 // pred_fallthru
          _
      $region32: #{tpu_custom_call.1} parent=5 // pred_fallthru
        _
      %p848 = scmp.le.s32.totalorder 2, %s16
      // Predicated region
      $region45: #{tpu_custom_call.1} parent=5 // pred_check
        %p849 = pneg %p848
      $region46: #{tpu_custom_call.1} parent=5 // pred_check_branch
        %851 = sbr.rel (%p849) target = $region48
      $region47: #{tpu_custom_call.1} parent=5 // pred_region
        %s852 = ssub.s32 %s16, 2
        // Predicated region
        $region49: #{tpu_custom_call.1} parent=47 // pred_check
          %p853 = pneg %p113
        $region50: #{tpu_custom_call.1} parent=47 // pred_check_branch
          %855 = sbr.rel (%p853) target = $region52
        $region51: #{tpu_custom_call.1} parent=47 // pred_region
          %s856 = sand.u32 %s98, 1
          %s857 = scalar_lea.sflag [#allocation4], %s856
          %s858 = sand.u32 %s98, 1
          %s859 = smul.addr %s858, 8
          %s860 = scalar_lea.vmem [#allocation7], %s859
          %861 = dma.done %s857, 128
        $region52: #{tpu_custom_call.1} parent=47 // pred_fallthru
          _
      $region48: #{tpu_custom_call.1} parent=5 // pred_fallthru
        _
    $region6: #{tpu_custom_call.1} parent=1 // loop_footer
      %s20 = sadd.s32 1, %s16
    $region7: #{tpu_custom_call.1} parent=1 // loop_footer_branch
      %15 = sbr.rel target = $region3
    $region8: #{tpu_custom_call.1} parent=1 // loop_exit
      _
    %862 = vsyncpa [#allocation3], 1
    %s863 = scalar_lea.sflag [#allocation3], 1
    %864 = vsyncpa %s863, 1
    %865 = vsyncpa [#allocation6], 1
    %866 = vsyncpa [#allocation4], 1
    %s867 = scalar_lea.sflag [#allocation4], 1
    %868 = vsyncpa %s867, 1

// kernel: tpu_custom_call.1
$region0: #{tpu_custom_call.1}
  #allocation0 [shape = 'u32[]', space=smem, size = 0x4, offset = 0x4, fixed_abs, tag = 'smem constant byte address 0x4 - core index']
  #allocation1 [shape = 'u32[144,128]{1,0:T(1,128)}', space=vmem, size = 0x12000, scoped, tag = 'internal scratch']
  %s0 = inlined_call_operand.hbm [shape: bf16[16,32], index: 0, kind: input, shape index: {}]
  %s1 = inlined_call_operand.hbm [shape: bf16[32,256], index: 1, kind: input, shape index: {}]
  %s2 = inlined_call_operand.vmem [shape: f32[1,256], index: 2, kind: input, shape index: {}]
  %s3 = inlined_call_operand.hbm [shape: f32[16,48], index: 3, kind: output, shape index: {}]
  %s4 = sld [smem:[#allocation0]]
  $region53: #{tpu_custom_call.1} parent=0
    _
  %s6 = ssub.s32 1, %s4
  %s7 = scalar_select 0, %s6, %s4
  $region1: #{tpu_custom_call.1} parent=0
    #allocation2 [shape = 'u8[4096]{0}', space=vmem, size = 0x1000, scoped, tag = 'input window, operand 0']
    #allocation3 [shape = 's32[2]{0}', space=sflag, size = 0x8, scoped, tag = 'scoped memory for tpu_custom_call.1']
    #allocation4 [shape = 's32[2]{0}', space=sflag, size = 0x8, scoped, tag = 'scoped memory for tpu_custom_call.1']
    #allocation5 [shape = 'u8[16384]{0}', space=vmem, size = 0x4000, scoped, tag = 'input window, operand 1, single buffered']
    #allocation6 [shape = 's32[1]{0}', space=sflag, size = 0x4, scoped, tag = 'scoped memory for tpu_custom_call.1']
    #allocation7 [shape = 'u8[8192]{0}', space=vmem, size = 0x2000, scoped, tag = 'output window, operand 0']
    %8 = vsyncpa [#allocation3], 0
    %s9 = scalar_lea.sflag [#allocation3], 1
    %10 = vsyncpa %s9, 0
    %11 = vsyncpa [#allocation6], 0
    %12 = vsyncpa [#allocation4], 0
    %s13 = scalar_lea.sflag [#allocation4], 1
    %14 = vsyncpa %s13, 0
    loop: start=0, step=1, limit=4
    $region2: #{tpu_custom_call.1} parent=1 // loop_pre_header
      _
    $region3: #{tpu_custom_call.1} parent=1 // loop_header
      %s16 = sphi 0, %s20
      %p17 = scmp.ge.s32.totalorder %s16, 4
      %s26 = sphi 0, %s28
      %s29 = sphi 0, %s26
      %s30 = sphi 0, %s29
      %s46 = sphi 0, %s30
      %s50 = sphi 0, %s50
      %s52 = sphi 0, %s50
      %s53 = sphi 0, %s52
      %s67 = sphi 0, %s53
      %s71 = sphi 0, %s71
      %s73 = sphi 0, %s71
      %s74 = sphi 0, %s73
      %s88 = sphi 0, %s74
      %s94 = sphi 0, %s96
      %s97 = sphi 0, %s94
      %s98 = sphi 0, %s97
      %s114 = sphi 0, %s98
    $region4: #{tpu_custom_call.1} parent=1 // loop_header_branch
      %19 = sbr.rel (%p17) target = $region8
    $region5: #{tpu_custom_call.1} parent=1 // loop_body
      %s21 = ssub.s32 %s16, 1
      %s22 = ssub.s32 %s16, 2
      %s23 = sadd.s32 %s16, 1
      %s24 = ssub.s32 %s16, %s23
      %p25 = scmp.eq.s32.totalorder %s24, 0
      %s27 = sadd.s32 %s26, 1
      %s28 = scalar_select %p25, %s26, %s27
      %p31 = pneg %p25
      %p32 = scmp.eq.s32.totalorder %s16, 1
      %p33 = por %p31, %p32
      %p34 = scmp.ne.s32.totalorder %s26, %s29
      %p35 = scmp.eq.s32.totalorder %s16, 0
      %p36 = por %p34, %p35
      %p37 = scmp.ne.s32.totalorder %s26, %s29
      %p38 = scmp.eq.s32.totalorder %s21, 1
      %p39 = por %p37, %p38
      %p40 = scmp.ne.s32.totalorder %s29, %s30
      %p41 = scmp.eq.s32.totalorder %s21, 0
      %p42 = por %p40, %p41
      %p43 = scmp.ne.s32.totalorder %s29, %s30
      %p44 = scmp.eq.s32.totalorder %s22, 1
      %p45 = por %p43, %p44
      %p47 = scmp.ne.s32.totalorder %s30, %s46
      %p48 = scmp.eq.s32.totalorder %s22, 0
      %p49 = por %p47, %p48
      %s51 = sadd.s32 %s50, 1
      %p54 = scmp.eq.s32.totalorder %s16, 1
      %p55 = scmp.ne.s32.totalorder %s50, %s52
      %p56 = scmp.eq.s32.totalorder %s16, 0
      %p57 = por %p55, %p56
      %p58 = scmp.ne.s32.totalorder %s50, %s52
      %p59 = scmp.eq.s32.totalorder %s21, 1
      %p60 = por %p58, %p59
      %p61 = scmp.ne.s32.totalorder %s52, %s53
      %p62 = scmp.eq.s32.totalorder %s21, 0
      %p63 = por %p61, %p62
      %p64 = scmp.ne.s32.totalorder %s52, %s53
      %p65 = scmp.eq.s32.totalorder %s22, 1
      %p66 = por %p64, %p65
      %p68 = scmp.ne.s32.totalorder %s53, %s67
      %p69 = scmp.eq.s32.totalorder %s22, 0
      %p70 = por %p68, %p69
      %s72 = sadd.s32 %s71, 1
      %p75 = scmp.eq.s32.totalorder %s16, 1
      %p76 = scmp.ne.s32.totalorder %s71, %s73
      %p77 = scmp.eq.s32.totalorder %s16, 0
      %p78 = por %p76, %p77
      %p79 = scmp.ne.s32.totalorder %s71, %s73
      %p80 = scmp.eq.s32.totalorder %s21, 1
      %p81 = por %p79, %p80
      %p82 = scmp.ne.s32.totalorder %s73, %s74
      %p83 = scmp.eq.s32.totalorder %s21, 0
      %p84 = por %p82, %p83
      %p85 = scmp.ne.s32.totalorder %s73, %s74
      %p86 = scmp.eq.s32.totalorder %s22, 1
      %p87 = por %p85, %p86
      %p89 = scmp.ne.s32.totalorder %s74, %s88
      %p90 = scmp.eq.s32.totalorder %s22, 0
      %p91 = por %p89, %p90
      %s92 = ssub.s32 %s16, %s23
      %p93 = scmp.eq.s32.totalorder %s92, 0
      %s95 = sadd.s32 %s94, 1
      %s96 = scalar_select %p93, %s94, %s95
      %p99 = pneg %p93
      %p100 = scmp.eq.s32.totalorder %s16, 1
      %p101 = por %p99, %p100
      %p102 = scmp.ne.s32.totalorder %s94, %s97
      %p103 = scmp.eq.s32.totalorder %s16, 0
      %p104 = por %p102, %p103
      %p105 = scmp.ne.s32.totalorder %s94, %s97
      %p106 = scmp.eq.s32.totalorder %s21, 1
      %p107 = por %p105, %p106
      %p108 = scmp.ne.s32.totalorder %s97, %s98
      %p109 = scmp.eq.s32.totalorder %s21, 0
      %p110 = por %p108, %p109
      %p111 = scmp.ne.s32.totalorder %s97, %s98
      %p112 = scmp.eq.s32.totalorder %s22, 1
      %p113 = por %p111, %p112
      %p115 = scmp.ne.s32.totalorder %s98, %s114
      %p116 = scmp.eq.s32.totalorder %s22, 0
      %p117 = por %p115, %p116
      %p118 = scmp.le.s32.totalorder 1, %s16
      %p119 = scmp.lt.s32.totalorder %s16, 3
      %p120 = pnand %p118, %p119
      %p121 = pneg %p120
      // Predicated region
      $region9: #{tpu_custom_call.1} parent=5 // pred_check
        _
      $region10: #{tpu_custom_call.1} parent=5 // pred_check_branch
        %123 = sbr.rel (%p120) target = $region12
      $region11: #{tpu_custom_call.1} parent=5 // pred_region
        %s124 = ssub.s32 %s16, 1
        // Predicated region
        $region13: #{tpu_custom_call.1} parent=11 // pred_check
          %p125 = pneg %p63
        $region14: #{tpu_custom_call.1} parent=11 // pred_check_branch
          %127 = sbr.rel (%p125) target = $region16
        $region15: #{tpu_custom_call.1} parent=11 // pred_region
          %s129 = ssub.s32 512, 512
          %130 = vsyncadd [#allocation6], %s129
          %s131 = sshll.u32 [#allocation5], 4
          %s132 = int_to_ptr.vmem [resolvable:$true] %s131
          %137 = dma.hbm_to_vmem [thread:$0]  %s1, 512, %s132, [#allocation6], 128, 128, 8
        $region16: #{tpu_custom_call.1} parent=11 // pred_fallthru
          _
        // Predicated region
        $region17: #{tpu_custom_call.1} parent=11 // pred_check
          %p138 = pneg %p84
        $region18: #{tpu_custom_call.1} parent=11 // pred_check_branch
          %140 = sbr.rel (%p138) target = $region20
        $region19: #{tpu_custom_call.1} parent=11 // pred_region
          _
        $region20: #{tpu_custom_call.1} parent=11 // pred_fallthru
          _
      $region12: #{tpu_custom_call.1} parent=5 // pred_fallthru
        _
      %p141 = scmp.lt.s32.totalorder %s16, 2
      // Predicated region
      $region21: #{tpu_custom_call.1} parent=5 // pred_check
        %p142 = pneg %p141
      $region22: #{tpu_custom_call.1} parent=5 // pred_check_branch
        %144 = sbr.rel (%p142) target = $region24
      $region23: #{tpu_custom_call.1} parent=5 // pred_region
        // Predicated region
        $region25: #{tpu_custom_call.1} parent=23 // pred_check
          %p145 = pneg %p36
        $region26: #{tpu_custom_call.1} parent=23 // pred_check_branch
          %147 = sbr.rel (%p145) target = $region28
        $region27: #{tpu_custom_call.1} parent=23 // pred_region
          %s148 = sand.u32 %s26, 1
          %s149 = scalar_lea.sflag [#allocation3], %s148
          %s150 = sand.u32 %s26, 1
          %s151 = smul.addr %s150, 4
          %s152 = scalar_lea.vmem [#allocation2], %s151
          %s154 = ssub.s32 64, 64
          %155 = vsyncadd %s149, %s154
          %s156 = smul.addr %s16, 64
          %s157 = scalar_lea.hbm %s0, %s156
          %s159 = sshll.u32 %s152, 4
          %s160 = int_to_ptr.vmem [resolvable:$true] %s159
          %162 = dma.hbm_to_vmem [thread:$0]  %s157, 64, %s160, %s149
        $region28: #{tpu_custom_call.1} parent=23 // pred_fallthru
          _
      $region24: #{tpu_custom_call.1} parent=5 // pred_fallthru
        _
      %p163 = scmp.le.s32.totalorder 1, %s16
      %p164 = scmp.lt.s32.totalorder %s16, 3
      %p165 = pnand %p163, %p164
      %p166 = pneg %p165
      // Predicated region
      $region29: #{tpu_custom_call.1} parent=5 // pred_check
        _
      $region30: #{tpu_custom_call.1} parent=5 // pred_check_branch
        %168 = sbr.rel (%p165) target = $region32
      $region31: #{tpu_custom_call.1} parent=5 // pred_region
        %s169 = ssub.s32 %s16, 1
        %s170 = sand.u32 %s29, 1
        %s171 = scalar_lea.sflag [#allocation3], %s170
        %s172 = sand.u32 %s29, 1
        %s173 = smul.addr %s172, 4
        %s174 = scalar_lea.vmem [#allocation2], %s173
        // Predicated region
        $region33: #{tpu_custom_call.1} parent=31 // pred_check
          %p175 = pneg %p42
        $region34: #{tpu_custom_call.1} parent=31 // pred_check_branch
          %177 = sbr.rel (%p175) target = $region36
        $region35: #{tpu_custom_call.1} parent=31 // pred_region
          %178 = dma.done %s171, 64
        $region36: #{tpu_custom_call.1} parent=31 // pred_fallthru
          _
        // Predicated region
        $region37: #{tpu_custom_call.1} parent=31 // pred_check
          %p179 = pneg %p63
        $region38: #{tpu_custom_call.1} parent=31 // pred_check_branch
          %181 = sbr.rel (%p179) target = $region40
        $region39: #{tpu_custom_call.1} parent=31 // pred_region
          %182 = dma.done [#allocation6], 512
        $region40: #{tpu_custom_call.1} parent=31 // pred_fallthru
          _
        %s183 = sand.u32 %s29, 1
        %s184 = scalar_lea.sflag [#allocation3], %s183
        %s185 = sand.u32 %s29, 1
        %s186 = smul.addr %s185, 4
        %s187 = scalar_lea.vmem [#allocation2], %s186
        %p188 = pneg %p42
        %p189 = pneg %p39
        %p190 = pneg %p63
        %p191 = pneg %p60
        %p192 = pneg %p84
        %p193 = pneg %p81
        %p194 = pneg %p110
        %p195 = pneg %p107
        %s196 = sand.u32 %s97, 1
        %s197 = scalar_lea.sflag [#allocation4], %s196
        %s198 = sand.u32 %s97, 1
        %s199 = smul.addr %s198, 8
        %s200 = scalar_lea.vmem [#allocation7], %s199
        %v202 = vld [vmem:[%s174] sm:$0xf]
        %v203 = vld [vmem:[#allocation5] sm:$0xff]
        %v204 = vld [vmem:[#allocation5 + $0x8] sm:$0xff]
        %v205 = vld [vmem:[#allocation5 + $0x10] sm:$0xff]
        %v206 = vld [vmem:[#allocation5 + $0x18] sm:$0xff]
        %v207 = vld [vmem:[%s2] sm:$0x3]
        %v209 = vlaneseq
        %v210 = vshrl.u32 %v209, 7
        %v211 = vsub.s32 0, %v210
        %v212 = vrot.slane %v207, %v211
        %v213 = vlaneseq
        %v214 = vshrl.u32 %v213, 7
        %v215 = vsub.s32 1, %v214
        %v216 = vrot.slane %v207, %v215
        %v223 = vunpack.c.l.b16 %v203
        %v224 = vunpack.c.h.b16 %v203
        %v225 = vunpack.c.l.b16 %v204
        %v226 = vunpack.c.h.b16 %v204
        %v227 = vunpack.c.l.b16 %v205
        %v228 = vunpack.c.h.b16 %v205
        %v229 = vunpack.c.l.b16 %v206
        %v230 = vunpack.c.h.b16 %v206
        %v231 = vpack.c.b16 %v225, %v223
        %v232 = vpack.c.b16 %v226, %v224
        %v233 = vpack.c.b16 %v229, %v227
        %v234 = vpack.c.b16 %v230, %v228
        %vm239 = vcmask 261120
        %v241 = vsel %vm239, %v202, 0
        %243 = vmatprep.subr.bf16.mxu0 0
        %244 = vmatpush1.bf16.msra.mxu0 0
        %245 = vmatprep.subr.bf16.mxu0 0
        %246 = vmatpush1.bf16.msra.mxu0 0
        %247 = vmatprep.subr.bf16.mxu0 0
        %248 = vmatpush1.bf16.msra.mxu0 0
        %249 = vmatprep.subr.bf16.mxu0 0
        %250 = vmatpush1.bf16.msra.mxu0 0
        %251 = vmatprep.subr.bf16.mxu0 0
        %252 = vmatpush1.bf16.msra.mxu0 0
        %253 = vmatprep.subr.bf16.mxu0 0
        %254 = vmatpush1.bf16.msra.mxu0 0
        %255 = vmatprep.subr.bf16.mxu0 %v234
        %256 = vmatpush1.bf16.msra.mxu0 %v233
        %257 = vmatprep.subr.bf16.mxu0 %v232
        %258 = vmatpush1.bf16.msra.mxu0 %v231
        %259 = vmatprep.subr.bf16.mxu0 0
        %260 = vmatpush2.bf16.msra.mxu0 0
        %261 = vmatprep.subr.bf16.mxu0 0
        %262 = vmatpush2.bf16.msra.mxu0 0
        %263 = vmatprep.subr.bf16.mxu0 0
        %264 = vmatpush2.bf16.msra.mxu0 0
        %265 = vmatprep.subr.bf16.mxu0 0
        %266 = vmatpush2.bf16.msra.mxu0 0
        %267 = vmatprep.subr.bf16.mxu0 0
        %268 = vmatpush2.bf16.msra.mxu0 0
        %269 = vmatprep.subr.bf16.mxu0 0
        %270 = vmatpush2.bf16.msra.mxu0 0
        %271 = vmatprep.subr.bf16.mxu0 0
        %272 = vmatpush2.bf16.msra.mxu0 0
        %273 = vmatprep.subr.bf16.mxu0 0
        %274 = vmatpush2.bf16.msra.mxu0 0
        %275 = vmatprep.mubr.bf16.mxu0 0
        %276 = vmatmul.mubr.bf16.gmra.mxu0 %v241
        %v277 = vpop.f32.mrf.mxu0
        %v278 = vadd.f32 %v212, %v277
        %v279 = vpop.f32.mrf.mxu0
        %v280 = vadd.f32 %v216, %v279
        %v281 = vpop.f32.mrf.mxu0
        %v282 = vpop.f32.mrf.mxu0
        %283 = vdwg.mxu0
        %v284 = vpack.c.bf16 %v278, %v278
        %286 = vrot.lane.b32.xlu0 %v284, 96
        %v287 = vpop.permute.xlu0 %286
        %vm288 = vcmask 130048
        %v290 = vsel %vm288, %v284, 0
        %v293 = vsel %vm288, %v287, 0
        %295 = vmatprep.subr.bf16.mxu0 0
        %296 = vmatpush1.bf16.xpose.msra.mxu0 0
        %297 = vmatprep.subr.bf16.mxu0 0
        %298 = vmatpush1.bf16.xpose.msra.mxu0 0
        %299 = vmatprep.subr.bf16.mxu0 0
        %300 = vmatpush1.bf16.xpose.msra.mxu0 0
        %301 = vmatprep.subr.bf16.mxu0 0
        %302 = vmatpush1.bf16.xpose.msra.mxu0 0
        %303 = vmatprep.subr.bf16.mxu0 0
        %304 = vmatpush1.bf16.xpose.msra.mxu0 0
        %305 = vmatprep.subr.bf16.mxu0 0
        %306 = vmatpush1.bf16.xpose.msra.mxu0 0
        %307 = vmatprep.subr.bf16.mxu0 0
        %308 = vmatpush1.bf16.xpose.msra.mxu0 0
        %309 = vmatprep.subr.bf16.mxu0 0
        %310 = vmatpush1.bf16.xpose.msra.mxu0 %v293
        %311 = vmatprep.subr.bf16.mxu0 0
        %312 = vmatpush2.bf16.xpose.msra.mxu0 0
        %313 = vmatprep.subr.bf16.mxu0 0
        %314 = vmatpush2.bf16.xpose.msra.mxu0 0
        %315 = vmatprep.subr.bf16.mxu0 0
        %316 = vmatpush2.bf16.xpose.msra.mxu0 0
        %317 = vmatprep.subr.bf16.mxu0 0
        %318 = vmatpush2.bf16.xpose.msra.mxu0 0
        %319 = vmatprep.subr.bf16.mxu0 0
        %320 = vmatpush2.bf16.xpose.msra.mxu0 0
        %321 = vmatprep.subr.bf16.mxu0 0
        %322 = vmatpush2.bf16.xpose.msra.mxu0 0
        %323 = vmatprep.subr.bf16.mxu0 0
        %324 = vmatpush2.bf16.xpose.msra.mxu0 0
        %325 = vmatprep.subr.bf16.mxu0 0
        %326 = vmatpush2.bf16.xpose.msra.mxu0 0
        %327 = vmatprep.mubr.bf16.mxu0 0
        %328 = vmatmul.mubr.bf16.gmra.mxu0 %v290
        %v329 = vpop.f32.mrf.mxu0
        %v330 = vadd.f32 0.0, %v329
        %v331 = vpop.f32.mrf.mxu0
        %v332 = vpop.f32.mrf.mxu0
        %v333 = vpop.f32.mrf.mxu0
        %334 = vdwg.mxu0
        %vm335 = vcmask 64512
        %v336 = vsel %vm335, %v330, -inf
        %337 = vmax.xlane.f32.xlu0 %v336
        %v338 = vpop.xlane.xlu0 %337
        %v339 = vsub.f32 %v330, %v338
        %v340 = vmul.f32 %v339, 1.442695
        %v341 = vpow.pop %v340
        %v342 = vsel %vm335, %v341, 0.0
        %343 = vadd.xlane.f32.xlu0 %v342
        %v344 = vpop.xlane.xlu0 %343
        %v345 = vrcp.pop %v344
        %v346 = vmul.f32 %v345, 0.5
        %v347 = vmul.f32 %v341, %v346
        %v348 = vpack.c.bf16 %v347, %v347
        %349 = vxpose.xlu0.c.b16.start [1/8] %v348, 128
        %350 = vxpose.xlu0.c.b16.cont [2/8] 0, 128
        %351 = vxpose.xlu0.c.b16.cont [3/8] 0, 128
        %352 = vxpose.xlu0.c.b16.cont [4/8] 0, 128
        %353 = vxpose.xlu0.c.b16.cont [5/8] 0, 128
        %354 = vxpose.xlu0.c.b16.cont [6/8] 0, 128
        %355 = vxpose.xlu0.c.b16.cont [7/8] 0, 128
        %356 = vxpose.xlu0.c.b16.end [8/8] 0, 128
        %v357 = vpop.trf.xlu0
        %v358 = vpop.trf.xlu0
        %v359 = vpop.trf.xlu0
        %v360 = vpop.trf.xlu0
        %v361 = vpop.trf.xlu0
        %v362 = vpop.trf.xlu0
        %v363 = vpop.trf.xlu0
        %v364 = vpop.trf.xlu0
        %365 = vrot.lane.b32.xlu0 %v284, 64
        %v366 = vpop.permute.xlu0 %365
        %v368 = vsel %vm335, %v357, 0
        %vm370 = vcmask 1043456
        %v372 = vsel %vm370, %v366, 0
        %374 = vmatprep.subr.bf16.mxu0 0
        %375 = vmatpush1.bf16.msra.mxu0 0
        %376 = vmatprep.subr.bf16.mxu0 0
        %377 = vmatpush1.bf16.msra.mxu0 0
        %378 = vmatprep.subr.bf16.mxu0 0
        %379 = vmatpush1.bf16.msra.mxu0 0
        %380 = vmatprep.subr.bf16.mxu0 0
        %381 = vmatpush1.bf16.msra.mxu0 0
        %382 = vmatprep.subr.bf16.mxu0 0
        %383 = vmatpush1.bf16.msra.mxu0 0
        %384 = vmatprep.subr.bf16.mxu0 0
        %385 = vmatpush1.bf16.msra.mxu0 0
        %386 = vmatprep.subr.bf16.mxu0 0
        %387 = vmatpush1.bf16.msra.mxu0 0
        %388 = vmatprep.subr.bf16.mxu0 0
        %389 = vmatpush1.bf16.msra.mxu0 %v372
        %390 = vmatprep.subr.bf16.mxu0 0
        %391 = vmatpush2.bf16.msra.mxu0 0
        %392 = vmatprep.subr.bf16.mxu0 0
        %393 = vmatpush2.bf16.msra.mxu0 0
        %394 = vmatprep.subr.bf16.mxu0 0
        %395 = vmatpush2.bf16.msra.mxu0 0
        %396 = vmatprep.subr.bf16.mxu0 0
        %397 = vmatpush2.bf16.msra.mxu0 0
        %398 = vmatprep.subr.bf16.mxu0 0
        %399 = vmatpush2.bf16.msra.mxu0 0
        %400 = vmatprep.subr.bf16.mxu0 0
        %401 = vmatpush2.bf16.msra.mxu0 0
        %402 = vmatprep.subr.bf16.mxu0 0
        %403 = vmatpush2.bf16.msra.mxu0 0
        %404 = vmatprep.subr.bf16.mxu0 0
        %405 = vmatpush2.bf16.msra.mxu0 0
        %406 = vmatprep.mubr.bf16.mxu0 0
        %407 = vmatmul.mubr.bf16.gmra.mxu0 %v368
        %v408 = vpop.f32.mrf.mxu0
        %v409 = vadd.f32 0.0, %v408
        %v410 = vpop.f32.mrf.mxu0
        %v411 = vpop.f32.mrf.mxu0
        %v412 = vpop.f32.mrf.mxu0
        %413 = vdwg.mxu0
        %414 = vrot.lane.b32.xlu0 %v284, 112
        %v415 = vpop.permute.xlu0 %414
        %416 = vrot.lane.b32.xlu0 %v284, 80
        %v417 = vpop.permute.xlu0 %416
        %v419 = vsel %vm288, %v415, 0
        %v422 = vsel %vm288, %v417, 0
        %424 = vmatprep.subr.bf16.mxu0 0
        %425 = vmatpush1.bf16.xpose.msra.mxu0 0
        %426 = vmatprep.subr.bf16.mxu0 0
        %427 = vmatpush1.bf16.xpose.msra.mxu0 0
        %428 = vmatprep.subr.bf16.mxu0 0
        %429 = vmatpush1.bf16.xpose.msra.mxu0 0
        %430 = vmatprep.subr.bf16.mxu0 0
        %431 = vmatpush1.bf16.xpose.msra.mxu0 0
        %432 = vmatprep.subr.bf16.mxu0 0
        %433 = vmatpush1.bf16.xpose.msra.mxu0 0
        %434 = vmatprep.subr.bf16.mxu0 0
        %435 = vmatpush1.bf16.xpose.msra.mxu0 0
        %436 = vmatprep.subr.bf16.mxu0 0
        %437 = vmatpush1.bf16.xpose.msra.mxu0 0
        %438 = vmatprep.subr.bf16.mxu0 0
        %439 = vmatpush1.bf16.xpose.msra.mxu0 %v422
        %440 = vmatprep.subr.bf16.mxu0 0
        %441 = vmatpush2.bf16.xpose.msra.mxu0 0
        %442 = vmatprep.subr.bf16.mxu0 0
        %443 = vmatpush2.bf16.xpose.msra.mxu0 0
        %444 = vmatprep.subr.bf16.mxu0 0
        %445 = vmatpush2.bf16.xpose.msra.mxu0 0
        %446 = vmatprep.subr.bf16.mxu0 0
        %447 = vmatpush2.bf16.xpose.msra.mxu0 0
        %448 = vmatprep.subr.bf16.mxu0 0
        %449 = vmatpush2.bf16.xpose.msra.mxu0 0
        %450 = vmatprep.subr.bf16.mxu0 0
        %451 = vmatpush2.bf16.xpose.msra.mxu0 0
        %452 = vmatprep.subr.bf16.mxu0 0
        %453 = vmatpush2.bf16.xpose.msra.mxu0 0
        %454 = vmatprep.subr.bf16.mxu0 0
        %455 = vmatpush2.bf16.xpose.msra.mxu0 0
        %456 = vmatprep.mubr.bf16.mxu0 0
        %457 = vmatmul.mubr.bf16.gmra.mxu0 %v419
        %v458 = vpop.f32.mrf.mxu0
        %v459 = vadd.f32 0.0, %v458
        %v460 = vpop.f32.mrf.mxu0
        %v461 = vpop.f32.mrf.mxu0
        %v462 = vpop.f32.mrf.mxu0
        %463 = vdwg.mxu0
        %v464 = vsel %vm335, %v459, -inf
        %465 = vmax.xlane.f32.xlu0 %v464
        %v466 = vpop.xlane.xlu0 %465
        %v467 = vsub.f32 %v459, %v466
        %v468 = vmul.f32 %v467, 1.442695
        %v469 = vpow.pop %v468
        %v470 = vsel %vm335, %v469, 0.0
        %471 = vadd.xlane.f32.xlu0 %v470
        %v472 = vpop.xlane.xlu0 %471
        %v473 = vrcp.pop %v472
        %v474 = vmul.f32 %v473, 0.5
        %v475 = vmul.f32 %v469, %v474
        %v476 = vpack.c.bf16 %v475, %v475
        %477 = vxpose.xlu0.c.b16.start [1/8] %v476, 128
        %478 = vxpose.xlu0.c.b16.cont [2/8] 0, 128
        %479 = vxpose.xlu0.c.b16.cont [3/8] 0, 128
        %480 = vxpose.xlu0.c.b16.cont [4/8] 0, 128
        %481 = vxpose.xlu0.c.b16.cont [5/8] 0, 128
        %482 = vxpose.xlu0.c.b16.cont [6/8] 0, 128
        %483 = vxpose.xlu0.c.b16.cont [7/8] 0, 128
        %484 = vxpose.xlu0.c.b16.end [8/8] 0, 128
        %v485 = vpop.trf.xlu0
        %v486 = vpop.trf.xlu0
        %v487 = vpop.trf.xlu0
        %v488 = vpop.trf.xlu0
        %v489 = vpop.trf.xlu0
        %v490 = vpop.trf.xlu0
        %v491 = vpop.trf.xlu0
        %v492 = vpop.trf.xlu0
        %493 = vrot.lane.b32.xlu0 %v284, 48
        %v494 = vpop.permute.xlu0 %493
        %v496 = vsel %vm335, %v485, 0
        %v499 = vsel %vm370, %v494, 0
        %501 = vmatprep.subr.bf16.mxu0 0
        %502 = vmatpush1.bf16.msra.mxu0 0
        %503 = vmatprep.subr.bf16.mxu0 0
        %504 = vmatpush1.bf16.msra.mxu0 0
        %505 = vmatprep.subr.bf16.mxu0 0
        %506 = vmatpush1.bf16.msra.mxu0 0
        %507 = vmatprep.subr.bf16.mxu0 0
        %508 = vmatpush1.bf16.msra.mxu0 0
        %509 = vmatprep.subr.bf16.mxu0 0
        %510 = vmatpush1.bf16.msra.mxu0 0
        %511 = vmatprep.subr.bf16.mxu0 0
        %512 = vmatpush1.bf16.msra.mxu0 0
        %513 = vmatprep.subr.bf16.mxu0 0
        %514 = vmatpush1.bf16.msra.mxu0 0
        %515 = vmatprep.subr.bf16.mxu0 0
        %516 = vmatpush1.bf16.msra.mxu0 %v499
        %517 = vmatprep.subr.bf16.mxu0 0
        %518 = vmatpush2.bf16.msra.mxu0 0
        %519 = vmatprep.subr.bf16.mxu0 0
        %520 = vmatpush2.bf16.msra.mxu0 0
        %521 = vmatprep.subr.bf16.mxu0 0
        %522 = vmatpush2.bf16.msra.mxu0 0
        %523 = vmatprep.subr.bf16.mxu0 0
        %524 = vmatpush2.bf16.msra.mxu0 0
        %525 = vmatprep.subr.bf16.mxu0 0
        %526 = vmatpush2.bf16.msra.mxu0 0
        %527 = vmatprep.subr.bf16.mxu0 0
        %528 = vmatpush2.bf16.msra.mxu0 0
        %529 = vmatprep.subr.bf16.mxu0 0
        %530 = vmatpush2.bf16.msra.mxu0 0
        %531 = vmatprep.subr.bf16.mxu0 0
        %532 = vmatpush2.bf16.msra.mxu0 0
        %533 = vmatprep.mubr.bf16.mxu0 0
        %534 = vmatmul.mubr.bf16.gmra.mxu0 %v496
        %v535 = vpop.f32.mrf.mxu0
        %v536 = vadd.f32 0.0, %v535
        %v537 = vpop.f32.mrf.mxu0
        %v538 = vpop.f32.mrf.mxu0
        %v539 = vpop.f32.mrf.mxu0
        %540 = vdwg.mxu0
        %542 = vrot.lane.b32.xlu0 %v475, 8
        %v543 = vpop.permute.xlu0 %542
        %546 = vrot.lane.b32.xlu0 %v409, 16
        %v547 = vpop.permute.xlu0 %546
        %550 = vrot.lane.b32.xlu0 %v536, 32
        %v551 = vpop.permute.xlu0 %550
        %v553 = vsel %vm335, %v347, %v543
        %v554 = vsel %vm288, %v553, %v547
        %v555 = vsel %vm239, %v554, %v551
        %vm556 = vcmask 392192
        %557 = vst.msk [vmem:[%s200] sm:$0xff] %vm556, %v555
        %v558 = vpack.c.bf16 %v280, %v280
        %560 = vrot.lane.b32.xlu0 %v558, 96
        %v561 = vpop.permute.xlu0 %560
        %v563 = vsel %vm288, %v558, 0
        %v566 = vsel %vm288, %v561, 0
        %568 = vmatprep.subr.bf16.mxu0 0
        %569 = vmatpush1.bf16.xpose.msra.mxu0 0
        %570 = vmatprep.subr.bf16.mxu0 0
        %571 = vmatpush1.bf16.xpose.msra.mxu0 0
        %572 = vmatprep.subr.bf16.mxu0 0
        %573 = vmatpush1.bf16.xpose.msra.mxu0 0
        %574 = vmatprep.subr.bf16.mxu0 0
        %575 = vmatpush1.bf16.xpose.msra.mxu0 0
        %576 = vmatprep.subr.bf16.mxu0 0
        %577 = vmatpush1.bf16.xpose.msra.mxu0 0
        %578 = vmatprep.subr.bf16.mxu0 0
        %579 = vmatpush1.bf16.xpose.msra.mxu0 0
        %580 = vmatprep.subr.bf16.mxu0 0
        %581 = vmatpush1.bf16.xpose.msra.mxu0 0
        %582 = vmatprep.subr.bf16.mxu0 0
        %583 = vmatpush1.bf16.xpose.msra.mxu0 %v566
        %584 = vmatprep.subr.bf16.mxu0 0
        %585 = vmatpush2.bf16.xpose.msra.mxu0 0
        %586 = vmatprep.subr.bf16.mxu0 0
        %587 = vmatpush2.bf16.xpose.msra.mxu0 0
        %588 = vmatprep.subr.bf16.mxu0 0
        %589 = vmatpush2.bf16.xpose.msra.mxu0 0
        %590 = vmatprep.subr.bf16.mxu0 0
        %591 = vmatpush2.bf16.xpose.msra.mxu0 0
        %592 = vmatprep.subr.bf16.mxu0 0
        %593 = vmatpush2.bf16.xpose.msra.mxu0 0
        %594 = vmatprep.subr.bf16.mxu0 0
        %595 = vmatpush2.bf16.xpose.msra.mxu0 0
        %596 = vmatprep.subr.bf16.mxu0 0
        %597 = vmatpush2.bf16.xpose.msra.mxu0 0
        %598 = vmatprep.subr.bf16.mxu0 0
        %599 = vmatpush2.bf16.xpose.msra.mxu0 0
        %600 = vmatprep.mubr.bf16.mxu0 0
        %601 = vmatmul.mubr.bf16.gmra.mxu0 %v563
        %v602 = vpop.f32.mrf.mxu0
        %v603 = vadd.f32 0.0, %v602
        %v604 = vpop.f32.mrf.mxu0
        %v605 = vpop.f32.mrf.mxu0
        %v606 = vpop.f32.mrf.mxu0
        %607 = vdwg.mxu0
        %v608 = vsel %vm335, %v603, -inf
        %609 = vmax.xlane.f32.xlu0 %v608
        %v610 = vpop.xlane.xlu0 %609
        %v611 = vsub.f32 %v603, %v610
        %v612 = vmul.f32 %v611, 1.442695
        %v613 = vpow.pop %v612
        %v614 = vsel %vm335, %v613, 0.0
        %615 = vadd.xlane.f32.xlu0 %v614
        %v616 = vpop.xlane.xlu0 %615
        %v617 = vrcp.pop %v616
        %v618 = vmul.f32 %v617, 0.5
        %v619 = vmul.f32 %v613, %v618
        %v620 = vpack.c.bf16 %v619, %v619
        %621 = vxpose.xlu0.c.b16.start [1/8] %v620, 128
        %622 = vxpose.xlu0.c.b16.cont [2/8] 0, 128
        %623 = vxpose.xlu0.c.b16.cont [3/8] 0, 128
        %624 = vxpose.xlu0.c.b16.cont [4/8] 0, 128
        %625 = vxpose.xlu0.c.b16.cont [5/8] 0, 128
        %626 = vxpose.xlu0.c.b16.cont [6/8] 0, 128
        %627 = vxpose.xlu0.c.b16.cont [7/8] 0, 128
        %628 = vxpose.xlu0.c.b16.end [8/8] 0, 128
        %v629 = vpop.trf.xlu0
        %v630 = vpop.trf.xlu0
        %v631 = vpop.trf.xlu0
        %v632 = vpop.trf.xlu0
        %v633 = vpop.trf.xlu0
        %v634 = vpop.trf.xlu0
        %v635 = vpop.trf.xlu0
        %v636 = vpop.trf.xlu0
        %637 = vrot.lane.b32.xlu0 %v558, 64
        %v638 = vpop.permute.xlu0 %637
        %v640 = vsel %vm335, %v629, 0
        %v643 = vsel %vm370, %v638, 0
        %645 = vmatprep.subr.bf16.mxu0 0
        %646 = vmatpush1.bf16.msra.mxu0 0
        %647 = vmatprep.subr.bf16.mxu0 0
        %648 = vmatpush1.bf16.msra.mxu0 0
        %649 = vmatprep.subr.bf16.mxu0 0
        %650 = vmatpush1.bf16.msra.mxu0 0
        %651 = vmatprep.subr.bf16.mxu0 0
        %652 = vmatpush1.bf16.msra.mxu0 0
        %653 = vmatprep.subr.bf16.mxu0 0
        %654 = vmatpush1.bf16.msra.mxu0 0
        %655 = vmatprep.subr.bf16.mxu0 0
        %656 = vmatpush1.bf16.msra.mxu0 0
        %657 = vmatprep.subr.bf16.mxu0 0
        %658 = vmatpush1.bf16.msra.mxu0 0
        %659 = vmatprep.subr.bf16.mxu0 0
        %660 = vmatpush1.bf16.msra.mxu0 %v643
        %661 = vmatprep.subr.bf16.mxu0 0
        %662 = vmatpush2.bf16.msra.mxu0 0
        %663 = vmatprep.subr.bf16.mxu0 0
        %664 = vmatpush2.bf16.msra.mxu0 0
        %665 = vmatprep.subr.bf16.mxu0 0
        %666 = vmatpush2.bf16.msra.mxu0 0
        %667 = vmatprep.subr.bf16.mxu0 0
        %668 = vmatpush2.bf16.msra.mxu0 0
        %669 = vmatprep.subr.bf16.mxu0 0
        %670 = vmatpush2.bf16.msra.mxu0 0
        %671 = vmatprep.subr.bf16.mxu0 0
        %672 = vmatpush2.bf16.msra.mxu0 0
        %673 = vmatprep.subr.bf16.mxu0 0
        %674 = vmatpush2.bf16.msra.mxu0 0
        %675 = vmatprep.subr.bf16.mxu0 0
        %676 = vmatpush2.bf16.msra.mxu0 0
        %677 = vmatprep.mubr.bf16.mxu0 0
        %678 = vmatmul.mubr.bf16.gmra.mxu0 %v640
        %v679 = vpop.f32.mrf.mxu0
        %v680 = vadd.f32 0.0, %v679
        %v681 = vpop.f32.mrf.mxu0
        %v682 = vpop.f32.mrf.mxu0
        %v683 = vpop.f32.mrf.mxu0
        %684 = vdwg.mxu0
        %685 = vrot.lane.b32.xlu0 %v558, 112
        %v686 = vpop.permute.xlu0 %685
        %687 = vrot.lane.b32.xlu0 %v558, 80
        %v688 = vpop.permute.xlu0 %687
        %v690 = vsel %vm288, %v686, 0
        %v693 = vsel %vm288, %v688, 0
        %695 = vmatprep.subr.bf16.mxu0 0
        %696 = vmatpush1.bf16.xpose.msra.mxu0 0
        %697 = vmatprep.subr.bf16.mxu0 0
        %698 = vmatpush1.bf16.xpose.msra.mxu0 0
        %699 = vmatprep.subr.bf16.mxu0 0
        %700 = vmatpush1.bf16.xpose.msra.mxu0 0
        %701 = vmatprep.subr.bf16.mxu0 0
        %702 = vmatpush1.bf16.xpose.msra.mxu0 0
        %703 = vmatprep.subr.bf16.mxu0 0
        %704 = vmatpush1.bf16.xpose.msra.mxu0 0
        %705 = vmatprep.subr.bf16.mxu0 0
        %706 = vmatpush1.bf16.xpose.msra.mxu0 0
        %707 = vmatprep.subr.bf16.mxu0 0
        %708 = vmatpush1.bf16.xpose.msra.mxu0 0
        %709 = vmatprep.subr.bf16.mxu0 0
        %710 = vmatpush1.bf16.xpose.msra.mxu0 %v693
        %711 = vmatprep.subr.bf16.mxu0 0
        %712 = vmatpush2.bf16.xpose.msra.mxu0 0
        %713 = vmatprep.subr.bf16.mxu0 0
        %714 = vmatpush2.bf16.xpose.msra.mxu0 0
        %715 = vmatprep.subr.bf16.mxu0 0
        %716 = vmatpush2.bf16.xpose.msra.mxu0 0
        %717 = vmatprep.subr.bf16.mxu0 0
        %718 = vmatpush2.bf16.xpose.msra.mxu0 0
        %719 = vmatprep.subr.bf16.mxu0 0
        %720 = vmatpush2.bf16.xpose.msra.mxu0 0
        %721 = vmatprep.subr.bf16.mxu0 0
        %722 = vmatpush2.bf16.xpose.msra.mxu0 0
        %723 = vmatprep.subr.bf16.mxu0 0
        %724 = vmatpush2.bf16.xpose.msra.mxu0 0
        %725 = vmatprep.subr.bf16.mxu0 0
        %726 = vmatpush2.bf16.xpose.msra.mxu0 0
        %727 = vmatprep.mubr.bf16.mxu0 0
        %728 = vmatmul.mubr.bf16.gmra.mxu0 %v690
        %v729 = vpop.f32.mrf.mxu0
        %v730 = vadd.f32 0.0, %v729
        %v731 = vpop.f32.mrf.mxu0
        %v732 = vpop.f32.mrf.mxu0
        %v733 = vpop.f32.mrf.mxu0
        %734 = vdwg.mxu0
        %v735 = vsel %vm335, %v730, -inf
        %736 = vmax.xlane.f32.xlu0 %v735
        %v737 = vpop.xlane.xlu0 %736
        %v738 = vsub.f32 %v730, %v737
        %v739 = vmul.f32 %v738, 1.442695
        %v740 = vpow.pop %v739
        %v741 = vsel %vm335, %v740, 0.0
        %742 = vadd.xlane.f32.xlu0 %v741
        %v743 = vpop.xlane.xlu0 %742
        %v744 = vrcp.pop %v743
        %v745 = vmul.f32 %v744, 0.5
        %v746 = vmul.f32 %v740, %v745
        %v747 = vpack.c.bf16 %v746, %v746
        %748 = vxpose.xlu0.c.b16.start [1/8] %v747, 128
        %749 = vxpose.xlu0.c.b16.cont [2/8] 0, 128
        %750 = vxpose.xlu0.c.b16.cont [3/8] 0, 128
        %751 = vxpose.xlu0.c.b16.cont [4/8] 0, 128
        %752 = vxpose.xlu0.c.b16.cont [5/8] 0, 128
        %753 = vxpose.xlu0.c.b16.cont [6/8] 0, 128
        %754 = vxpose.xlu0.c.b16.cont [7/8] 0, 128
        %755 = vxpose.xlu0.c.b16.end [8/8] 0, 128
        %v756 = vpop.trf.xlu0
        %v757 = vpop.trf.xlu0
        %v758 = vpop.trf.xlu0
        %v759 = vpop.trf.xlu0
        %v760 = vpop.trf.xlu0
        %v761 = vpop.trf.xlu0
        %v762 = vpop.trf.xlu0
        %v763 = vpop.trf.xlu0
        %764 = vrot.lane.b32.xlu0 %v558, 48
        %v765 = vpop.permute.xlu0 %764
        %v767 = vsel %vm335, %v756, 0
        %v770 = vsel %vm370, %v765, 0
        %772 = vmatprep.subr.bf16.mxu0 0
        %773 = vmatpush1.bf16.msra.mxu0 0
        %774 = vmatprep.subr.bf16.mxu0 0
        %775 = vmatpush1.bf16.msra.mxu0 0
        %776 = vmatprep.subr.bf16.mxu0 0
        %777 = vmatpush1.bf16.msra.mxu0 0
        %778 = vmatprep.subr.bf16.mxu0 0
        %779 = vmatpush1.bf16.msra.mxu0 0
        %780 = vmatprep.subr.bf16.mxu0 0
        %781 = vmatpush1.bf16.msra.mxu0 0
        %782 = vmatprep.subr.bf16.mxu0 0
        %783 = vmatpush1.bf16.msra.mxu0 0
        %784 = vmatprep.subr.bf16.mxu0 0
        %785 = vmatpush1.bf16.msra.mxu0 0
        %786 = vmatprep.subr.bf16.mxu0 0
        %787 = vmatpush1.bf16.msra.mxu0 %v770
        %788 = vmatprep.subr.bf16.mxu0 0
        %789 = vmatpush2.bf16.msra.mxu0 0
        %790 = vmatprep.subr.bf16.mxu0 0
        %791 = vmatpush2.bf16.msra.mxu0 0
        %792 = vmatprep.subr.bf16.mxu0 0
        %793 = vmatpush2.bf16.msra.mxu0 0
        %794 = vmatprep.subr.bf16.mxu0 0
        %795 = vmatpush2.bf16.msra.mxu0 0
        %796 = vmatprep.subr.bf16.mxu0 0
        %797 = vmatpush2.bf16.msra.mxu0 0
        %798 = vmatprep.subr.bf16.mxu0 0
        %799 = vmatpush2.bf16.msra.mxu0 0
        %800 = vmatprep.subr.bf16.mxu0 0
        %801 = vmatpush2.bf16.msra.mxu0 0
        %802 = vmatprep.subr.bf16.mxu0 0
        %803 = vmatpush2.bf16.msra.mxu0 0
        %804 = vmatprep.mubr.bf16.mxu0 0
        %805 = vmatmul.mubr.bf16.gmra.mxu0 %v767
        %v806 = vpop.f32.mrf.mxu0
        %v807 = vadd.f32 0.0, %v806
        %v808 = vpop.f32.mrf.mxu0
        %v809 = vpop.f32.mrf.mxu0
        %v810 = vpop.f32.mrf.mxu0
        %811 = vdwg.mxu0
        %813 = vrot.lane.b32.xlu0 %v746, 8
        %v814 = vpop.permute.xlu0 %813
        %817 = vrot.lane.b32.xlu0 %v680, 16
        %v818 = vpop.permute.xlu0 %817
        %821 = vrot.lane.b32.xlu0 %v807, 32
        %v822 = vpop.permute.xlu0 %821
        %v824 = vsel %vm335, %v619, %v814
        %v825 = vsel %vm288, %v824, %v818
        %v826 = vsel %vm239, %v825, %v822
        %v827 = vld [vmem:[%s200] sm:$0xff]
        %v828 = vadd.f32 %v827, %v826
        %829 = vst.msk [vmem:[%s200] sm:$0xff] %vm556, %v828
        %s830 = sand.u32 %s97, 1
        %s831 = scalar_lea.sflag [#allocation4], %s830
        %s832 = sand.u32 %s97, 1
        %s833 = smul.addr %s832, 8
        %s834 = scalar_lea.vmem [#allocation7], %s833
        // Predicated region
        $region41: #{tpu_custom_call.1} parent=31 // pred_check
          %p835 = pneg %p107
        $region42: #{tpu_custom_call.1} parent=31 // pred_check_branch
          %837 = sbr.rel (%p835) target = $region44
        $region43: #{tpu_custom_call.1} parent=31 // pred_region
          %s839 = ssub.s32 128, 128
          %840 = vsyncadd %s831, %s839
          %s841 = smul.addr %s21, 128
          %s842 = scalar_lea.hbm %s3, %s841
          %s844 = sshll.u32 %s834, 4
          %s845 = int_to_ptr.vmem [resolvable:$true] %s844
          %847 = dma.vmem_to_hbm [thread:$0]  %s845, 128, %s842, %s831
        $region44: #{tpu_custom_call.1} parent=31 // pred_fallthru
          _
      $region32: #{tpu_custom_call.1} parent=5 // pred_fallthru
        _
      %p848 = scmp.le.s32.totalorder 2, %s16
      // Predicated region
      $region45: #{tpu_custom_call.1} parent=5 // pred_check
        %p849 = pneg %p848
      $region46: #{tpu_custom_call.1} parent=5 // pred_check_branch
        %851 = sbr.rel (%p849) target = $region48
      $region47: #{tpu_custom_call.1} parent=5 // pred_region
        %s852 = ssub.s32 %s16, 2
        // Predicated region
        $region49: #{tpu_custom_call.1} parent=47 // pred_check
          %p853 = pneg %p113
        $region50: #{tpu_custom_call.1} parent=47 // pred_check_branch
          %855 = sbr.rel (%p853) target = $region52
        $region51: #{tpu_custom_call.1} parent=47 // pred_region
          %s856 = sand.u32 %s98, 1
          %s857 = scalar_lea.sflag [#allocation4], %s856
          %s858 = sand.u32 %s98, 1
          %s859 = smul.addr %s858, 8
          %s860 = scalar_lea.vmem [#allocation7], %s859
          %861 = dma.done %s857, 128
        $region52: #{tpu_custom_call.1} parent=47 // pred_fallthru
          _
      $region48: #{tpu_custom_call.1} parent=5 // pred_fallthru
        _
    $region6: #{tpu_custom_call.1} parent=1 // loop_footer
      %s20 = sadd.s32 1, %s16
    $region7: #{tpu_custom_call.1} parent=1 // loop_footer_branch
      %15 = sbr.rel target = $region3
    $region8: #{tpu_custom_call.1} parent=1 // loop_exit
      _
    %862 = vsyncpa [#allocation3], 1
    %s863 = scalar_lea.sflag [#allocation3], 1
    %864 = vsyncpa %s863, 1
    %865 = vsyncpa [#allocation6], 1
    %866 = vsyncpa [#allocation4], 1
    %s867 = scalar_lea.sflag [#allocation4], 1
    %868 = vsyncpa %s867, 1

</llo_original>
